<compile_context>
chip_gen: v7x
topology: tpu7x:2x2x1
jax: 0.10.0
libtpu: 0.0.40
codegen_flags: <defaults>
</compile_context>

<pallas_src>
import functools

import jax
import jax.numpy as jnp
from jax.experimental import pallas as pl
from jax.experimental.pallas import tpu as pltpu

K = 3      # conv kernel size
CIN = 3    # in channels
COUT = 3   # out channels


def _conv3x3_kernel(w_ref, b_ref, x_ref, o_ref, *, H, W, Wp):
    """3x3 'same' conv for one batch element, 2-D zero-halo layout.

    w_ref : SMEM (COUT*CIN*K*K,) f32   weights, OIHW-flattened (scalar prefetch)
    b_ref : SMEM (COUT,)         f32   bias                     (scalar prefetch)
    x_ref : VMEM (1, 1, CIN, H, W)     input frame 0 block
    o_ref : VMEM (1, COUT, H, Wp)      output block, lane-padded width (lane-dense)
    """
    f32 = jnp.float32
    zrow = jnp.zeros((1, Wp), f32)
    zcols = jnp.zeros((H, Wp - W), f32)
    zcol = jnp.zeros((H + 2, 1), f32)

    # Bias-in-init: one accumulator slab per output channel.
    accs = [jnp.full((H, Wp), b_ref[co], dtype=f32) for co in range(COUT)]

    for ci in range(CIN):
        xc = x_ref[0, 0, ci, :, :].astype(f32)                      # (H, W)
        body = jnp.concatenate([xc, zcols], axis=1)                 # (H, Wp)   right zero cols
        chan = jnp.concatenate([zrow, body, zrow], axis=0)          # (H+2, Wp) top/bottom zero rows
        # Column-shifted variants (built once per channel, shared by all taps):
        #   variants[kw][r, w] == chan[r, w + (kw - 1)] with zero outside the image.
        variants = (
            jnp.concatenate([zcol, chan[:, :Wp - 1]], axis=1),      # dw = -1
            chan,                                                   # dw =  0
            jnp.concatenate([chan[:, 1:], zcol], axis=1),           # dw = +1 (col W is zero)
        )
        for kh in range(K):
            for kw in range(K):
                tap = variants[kw][kh:kh + H, :]                    # (H, Wp) static slice
                for co in range(COUT):
                    widx = ((co * CIN + ci) * K + kh) * K + kw
                    accs[co] = accs[co] + w_ref[widx] * tap         # VPU scalar-broadcast MAC

    for co in range(COUT):
        o_ref[0, co, :, :] = accs[co].astype(o_ref.dtype)           # direct, lane-dense store


def interpolate_example_forward(x_ntchw, w_oihw, bias):
    """Pallas equivalent of InterpolateExample.forward: Conv2d(3,3,3,1,1)(x[:, 0])."""
    N, T, C, H, W = x_ntchw.shape
    assert C == CIN
    # Lane-padded width: >= W + 1 so the dw=+1 tap at column W-1 reads a zero column,
    # and every store is a full-lane (unmasked) vst.
    Wp = -(-(W + 1) // 128) * 128

    w_flat = w_oihw.reshape(-1).astype(jnp.float32)     # OIHW-flattened
    b_flat = bias.reshape(COUT).astype(jnp.float32)

    kernel = functools.partial(_conv3x3_kernel, H=H, W=W, Wp=Wp)

    # TODO(synk): for production frame sizes add a row-tile grid axis (TH multiple
    # of 8, 1-row halos) so double-buffered blocks fit v7x's scoped VMEM.
    y_pad = pl.pallas_call(
        kernel,
        out_shape=jax.ShapeDtypeStruct((N, COUT, H, Wp), x_ntchw.dtype),
        grid_spec=pltpu.PrefetchScalarGridSpec(
            num_scalar_prefetch=2,            # weights + bias -> SMEM scalars
            grid=(N,),
            in_specs=[
                pl.BlockSpec((1, 1, CIN, H, W),
                             lambda b, w, bb: (b, 0, 0, 0, 0)),     # frame 0 only
            ],
            out_specs=pl.BlockSpec((1, COUT, H, Wp),
                                   lambda b, w, bb: (b, 0, 0, 0)),
        ),
        compiler_params=pltpu.CompilerParams(
            dimension_semantics=("parallel",)),
    )(w_flat, b_flat, x_ntchw)

    return y_pad[..., :W]                     # drop lane padding (tiny XLA slice)


def _reference_forward(x_ntchw, w_oihw, bias):
    """Pure-JAX reference (lax conv) for validation."""
    x0 = x_ntchw[:, 0]
    y = jax.lax.conv_general_dilated(
        x0, w_oihw, window_strides=(1, 1), padding=((1, 1), (1, 1)),
        dimension_numbers=("NCHW", "OIHW", "NCHW"))
    return y + bias.reshape(1, COUT, 1, 1)


if __name__ == "__main__":
    key = jax.random.PRNGKey(0)
    k_x, k_w, k_b = jax.random.split(key, 3)

    # Small shapes consistent with the module: batch=2, T=5 frames, C=3, 16x16.
    N, T, H, W = 2, 5, 16, 16
    x = jax.random.normal(k_x, (N, T, CIN, H, W), dtype=jnp.float32)

    # Deterministic synthetic Conv2d(3, 3, 3) parameters (OIHW) + bias.
    fan_in = CIN * K * K
    w = jax.random.uniform(k_w, (COUT, CIN, K, K), dtype=jnp.float32,
                           minval=-1.0, maxval=1.0) / jnp.sqrt(fan_in)
    b = jax.random.uniform(k_b, (COUT,), dtype=jnp.float32,
                           minval=-1.0, maxval=1.0) / jnp.sqrt(fan_in)

    fwd = jax.jit(interpolate_example_forward)
    y = jax.block_until_ready(fwd(x, w, b))

    y_ref = _reference_forward(x, w, b)
    assert y.shape == (N, COUT, H, W)
    assert jnp.allclose(y, y_ref, atol=1e-4, rtol=1e-4), "mismatch vs reference"

    print("KERNEL_OK")
</pallas_src>

<mosaic_0001>
module attributes {stable_mosaic.version = 11 : i64} {
  func.func @_conv3x3_kernel(%arg0: i32, %arg1: memref<81xf32, #tpu.memory_space<smem>>, %arg2: memref<3xf32, #tpu.memory_space<smem>>, %arg3: memref<1x1x3x16x16xf32, #tpu.memory_space<vmem>>, %arg4: memref<1x3x16x128xf32, #tpu.memory_space<vmem>>) attributes {dimension_semantics = [#tpu.dimension_semantics<parallel>], iteration_bounds = array<i64: 2>, scalar_prefetch = 2 : i64, scratch_operands = 0 : i64, tpu.core_type = #tpu.core_type<tc>, window_params = [{transform_indices = @transform_0, window_bounds = array<i64: 1, 1, 3, 16, 16>}, {transform_indices = @transform_1, window_bounds = array<i64: 1, 3, 16, 128>}]} {
    %cst = arith.constant 0.000000e+00 : f32
    %0 = vector.broadcast %cst : f32 to vector<1x128xf32>
    %cst_0 = arith.constant 0.000000e+00 : f32
    %1 = vector.broadcast %cst_0 : f32 to vector<16x112xf32>
    %cst_1 = arith.constant 0.000000e+00 : f32
    %2 = vector.broadcast %cst_1 : f32 to vector<18x1xf32>
    %c0 = arith.constant 0 : index
    %3 = memref.load %arg2[%c0] : memref<3xf32, #tpu.memory_space<smem>>
    %4 = vector.broadcast %3 : f32 to vector<16x128xf32>
    %c1 = arith.constant 1 : index
    %5 = memref.load %arg2[%c1] : memref<3xf32, #tpu.memory_space<smem>>
    %6 = vector.broadcast %5 : f32 to vector<16x128xf32>
    %c2 = arith.constant 2 : index
    %7 = memref.load %arg2[%c2] : memref<3xf32, #tpu.memory_space<smem>>
    %8 = vector.broadcast %7 : f32 to vector<16x128xf32>
    %c0_2 = arith.constant 0 : index
    %c0_3 = arith.constant 0 : index
    %c0_4 = arith.constant 0 : index
    %c0_5 = arith.constant 0 : index
    %c0_6 = arith.constant 0 : index
    %9 = vector.load %arg3[%c0_2, %c0_3, %c0_4, %c0_5, %c0_6] : memref<1x1x3x16x16xf32, #tpu.memory_space<vmem>>, vector<1x1x1x16x16xf32>
    %10 = vector.shape_cast %9 : vector<1x1x1x16x16xf32> to vector<16x16xf32>
    %11 = tpu.concatenate %10, %1 in 1 : vector<16x16xf32>, vector<16x112xf32> -> vector<16x128xf32>
    %12 = tpu.concatenate %0, %11, %0 in 0 : vector<1x128xf32>, vector<16x128xf32>, vector<1x128xf32> -> vector<18x128xf32>
    %13 = vector.extract_strided_slice %12 {offsets = [0, 0], sizes = [18, 127], strides = [1, 1]} : vector<18x128xf32> to vector<18x127xf32>
    %14 = tpu.concatenate %2, %13 in 1 : vector<18x1xf32>, vector<18x127xf32> -> vector<18x128xf32>
    %15 = vector.extract_strided_slice %12 {offsets = [0, 1], sizes = [18, 127], strides = [1, 1]} : vector<18x128xf32> to vector<18x127xf32>
    %16 = tpu.concatenate %15, %2 in 1 : vector<18x127xf32>, vector<18x1xf32> -> vector<18x128xf32>
    %17 = vector.extract_strided_slice %14 {offsets = [0, 0], sizes = [16, 128], strides = [1, 1]} : vector<18x128xf32> to vector<16x128xf32>
    %c0_7 = arith.constant 0 : index
    %18 = memref.load %arg1[%c0_7] : memref<81xf32, #tpu.memory_space<smem>>
    %19 = vector.broadcast %18 : f32 to vector<16x128xf32>
    %20 = arith.mulf %19, %17 : vector<16x128xf32>
    %21 = arith.addf %4, %20 : vector<16x128xf32>
    %c27 = arith.constant 27 : index
    %22 = memref.load %arg1[%c27] : memref<81xf32, #tpu.memory_space<smem>>
    %23 = vector.broadcast %22 : f32 to vector<16x128xf32>
    %24 = arith.mulf %23, %17 : vector<16x128xf32>
    %25 = arith.addf %6, %24 : vector<16x128xf32>
    %c54 = arith.constant 54 : index
    %26 = memref.load %arg1[%c54] : memref<81xf32, #tpu.memory_space<smem>>
    %27 = vector.broadcast %26 : f32 to vector<16x128xf32>
    %28 = arith.mulf %27, %17 : vector<16x128xf32>
    %29 = arith.addf %8, %28 : vector<16x128xf32>
    %30 = vector.extract_strided_slice %12 {offsets = [0, 0], sizes = [16, 128], strides = [1, 1]} : vector<18x128xf32> to vector<16x128xf32>
    %c1_8 = arith.constant 1 : index
    %31 = memref.load %arg1[%c1_8] : memref<81xf32, #tpu.memory_space<smem>>
    %32 = vector.broadcast %31 : f32 to vector<16x128xf32>
    %33 = arith.mulf %32, %30 : vector<16x128xf32>
    %34 = arith.addf %21, %33 : vector<16x128xf32>
    %c28 = arith.constant 28 : index
    %35 = memref.load %arg1[%c28] : memref<81xf32, #tpu.memory_space<smem>>
    %36 = vector.broadcast %35 : f32 to vector<16x128xf32>
    %37 = arith.mulf %36, %30 : vector<16x128xf32>
    %38 = arith.addf %25, %37 : vector<16x128xf32>
    %c55 = arith.constant 55 : index
    %39 = memref.load %arg1[%c55] : memref<81xf32, #tpu.memory_space<smem>>
    %40 = vector.broadcast %39 : f32 to vector<16x128xf32>
    %41 = arith.mulf %40, %30 : vector<16x128xf32>
    %42 = arith.addf %29, %41 : vector<16x128xf32>
    %43 = vector.extract_strided_slice %16 {offsets = [0, 0], sizes = [16, 128], strides = [1, 1]} : vector<18x128xf32> to vector<16x128xf32>
    %c2_9 = arith.constant 2 : index
    %44 = memref.load %arg1[%c2_9] : memref<81xf32, #tpu.memory_space<smem>>
    %45 = vector.broadcast %44 : f32 to vector<16x128xf32>
    %46 = arith.mulf %45, %43 : vector<16x128xf32>
    %47 = arith.addf %34, %46 : vector<16x128xf32>
    %c29 = arith.constant 29 : index
    %48 = memref.load %arg1[%c29] : memref<81xf32, #tpu.memory_space<smem>>
    %49 = vector.broadcast %48 : f32 to vector<16x128xf32>
    %50 = arith.mulf %49, %43 : vector<16x128xf32>
    %51 = arith.addf %38, %50 : vector<16x128xf32>
    %c56 = arith.constant 56 : index
    %52 = memref.load %arg1[%c56] : memref<81xf32, #tpu.memory_space<smem>>
    %53 = vector.broadcast %52 : f32 to vector<16x128xf32>
    %54 = arith.mulf %53, %43 : vector<16x128xf32>
    %55 = arith.addf %42, %54 : vector<16x128xf32>
    %56 = vector.extract_strided_slice %14 {offsets = [1, 0], sizes = [16, 128], strides = [1, 1]} : vector<18x128xf32> to vector<16x128xf32>
    %c3 = arith.constant 3 : index
    %57 = memref.load %arg1[%c3] : memref<81xf32, #tpu.memory_space<smem>>
    %58 = vector.broadcast %57 : f32 to vector<16x128xf32>
    %59 = arith.mulf %58, %56 : vector<16x128xf32>
    %60 = arith.addf %47, %59 : vector<16x128xf32>
    %c30 = arith.constant 30 : index
    %61 = memref.load %arg1[%c30] : memref<81xf32, #tpu.memory_space<smem>>
    %62 = vector.broadcast %61 : f32 to vector<16x128xf32>
    %63 = arith.mulf %62, %56 : vector<16x128xf32>
    %64 = arith.addf %51, %63 : vector<16x128xf32>
    %c57 = arith.constant 57 : index
    %65 = memref.load %arg1[%c57] : memref<81xf32, #tpu.memory_space<smem>>
    %66 = vector.broadcast %65 : f32 to vector<16x128xf32>
    %67 = arith.mulf %66, %56 : vector<16x128xf32>
    %68 = arith.addf %55, %67 : vector<16x128xf32>
    %69 = vector.extract_strided_slice %12 {offsets = [1, 0], sizes = [16, 128], strides = [1, 1]} : vector<18x128xf32> to vector<16x128xf32>
    %c4 = arith.constant 4 : index
    %70 = memref.load %arg1[%c4] : memref<81xf32, #tpu.memory_space<smem>>
    %71 = vector.broadcast %70 : f32 to vector<16x128xf32>
    %72 = arith.mulf %71, %69 : vector<16x128xf32>
    %73 = arith.addf %60, %72 : vector<16x128xf32>
    %c31 = arith.constant 31 : index
    %74 = memref.load %arg1[%c31] : memref<81xf32, #tpu.memory_space<smem>>
    %75 = vector.broadcast %74 : f32 to vector<16x128xf32>
    %76 = arith.mulf %75, %69 : vector<16x128xf32>
    %77 = arith.addf %64, %76 : vector<16x128xf32>
    %c58 = arith.constant 58 : index
    %78 = memref.load %arg1[%c58] : memref<81xf32, #tpu.memory_space<smem>>
    %79 = vector.broadcast %78 : f32 to vector<16x128xf32>
    %80 = arith.mulf %79, %69 : vector<16x128xf32>
    %81 = arith.addf %68, %80 : vector<16x128xf32>
    %82 = vector.extract_strided_slice %16 {offsets = [1, 0], sizes = [16, 128], strides = [1, 1]} : vector<18x128xf32> to vector<16x128xf32>
    %c5 = arith.constant 5 : index
    %83 = memref.load %arg1[%c5] : memref<81xf32, #tpu.memory_space<smem>>
    %84 = vector.broadcast %83 : f32 to vector<16x128xf32>
    %85 = arith.mulf %84, %82 : vector<16x128xf32>
    %86 = arith.addf %73, %85 : vector<16x128xf32>
    %c32 = arith.constant 32 : index
    %87 = memref.load %arg1[%c32] : memref<81xf32, #tpu.memory_space<smem>>
    %88 = vector.broadcast %87 : f32 to vector<16x128xf32>
    %89 = arith.mulf %88, %82 : vector<16x128xf32>
    %90 = arith.addf %77, %89 : vector<16x128xf32>
    %c59 = arith.constant 59 : index
    %91 = memref.load %arg1[%c59] : memref<81xf32, #tpu.memory_space<smem>>
    %92 = vector.broadcast %91 : f32 to vector<16x128xf32>
    %93 = arith.mulf %92, %82 : vector<16x128xf32>
    %94 = arith.addf %81, %93 : vector<16x128xf32>
    %95 = vector.extract_strided_slice %14 {offsets = [2, 0], sizes = [16, 128], strides = [1, 1]} : vector<18x128xf32> to vector<16x128xf32>
    %c6 = arith.constant 6 : index
    %96 = memref.load %arg1[%c6] : memref<81xf32, #tpu.memory_space<smem>>
    %97 = vector.broadcast %96 : f32 to vector<16x128xf32>
    %98 = arith.mulf %97, %95 : vector<16x128xf32>
    %99 = arith.addf %86, %98 : vector<16x128xf32>
    %c33 = arith.constant 33 : index
    %100 = memref.load %arg1[%c33] : memref<81xf32, #tpu.memory_space<smem>>
    %101 = vector.broadcast %100 : f32 to vector<16x128xf32>
    %102 = arith.mulf %101, %95 : vector<16x128xf32>
    %103 = arith.addf %90, %102 : vector<16x128xf32>
    %c60 = arith.constant 60 : index
    %104 = memref.load %arg1[%c60] : memref<81xf32, #tpu.memory_space<smem>>
    %105 = vector.broadcast %104 : f32 to vector<16x128xf32>
    %106 = arith.mulf %105, %95 : vector<16x128xf32>
    %107 = arith.addf %94, %106 : vector<16x128xf32>
    %108 = vector.extract_strided_slice %12 {offsets = [2, 0], sizes = [16, 128], strides = [1, 1]} : vector<18x128xf32> to vector<16x128xf32>
    %c7 = arith.constant 7 : index
    %109 = memref.load %arg1[%c7] : memref<81xf32, #tpu.memory_space<smem>>
    %110 = vector.broadcast %109 : f32 to vector<16x128xf32>
    %111 = arith.mulf %110, %108 : vector<16x128xf32>
    %112 = arith.addf %99, %111 : vector<16x128xf32>
    %c34 = arith.constant 34 : index
    %113 = memref.load %arg1[%c34] : memref<81xf32, #tpu.memory_space<smem>>
    %114 = vector.broadcast %113 : f32 to vector<16x128xf32>
    %115 = arith.mulf %114, %108 : vector<16x128xf32>
    %116 = arith.addf %103, %115 : vector<16x128xf32>
    %c61 = arith.constant 61 : index
    %117 = memref.load %arg1[%c61] : memref<81xf32, #tpu.memory_space<smem>>
    %118 = vector.broadcast %117 : f32 to vector<16x128xf32>
    %119 = arith.mulf %118, %108 : vector<16x128xf32>
    %120 = arith.addf %107, %119 : vector<16x128xf32>
    %121 = vector.extract_strided_slice %16 {offsets = [2, 0], sizes = [16, 128], strides = [1, 1]} : vector<18x128xf32> to vector<16x128xf32>
    %c8 = arith.constant 8 : index
    %122 = memref.load %arg1[%c8] : memref<81xf32, #tpu.memory_space<smem>>
    %123 = vector.broadcast %122 : f32 to vector<16x128xf32>
    %124 = arith.mulf %123, %121 : vector<16x128xf32>
    %125 = arith.addf %112, %124 : vector<16x128xf32>
    %c35 = arith.constant 35 : index
    %126 = memref.load %arg1[%c35] : memref<81xf32, #tpu.memory_space<smem>>
    %127 = vector.broadcast %126 : f32 to vector<16x128xf32>
    %128 = arith.mulf %127, %121 : vector<16x128xf32>
    %129 = arith.addf %116, %128 : vector<16x128xf32>
    %c62 = arith.constant 62 : index
    %130 = memref.load %arg1[%c62] : memref<81xf32, #tpu.memory_space<smem>>
    %131 = vector.broadcast %130 : f32 to vector<16x128xf32>
    %132 = arith.mulf %131, %121 : vector<16x128xf32>
    %133 = arith.addf %120, %132 : vector<16x128xf32>
    %c0_10 = arith.constant 0 : index
    %c0_11 = arith.constant 0 : index
    %c1_12 = arith.constant 1 : index
    %c0_13 = arith.constant 0 : index
    %c0_14 = arith.constant 0 : index
    %134 = vector.load %arg3[%c0_10, %c0_11, %c1_12, %c0_13, %c0_14] : memref<1x1x3x16x16xf32, #tpu.memory_space<vmem>>, vector<1x1x1x16x16xf32>
    %135 = vector.shape_cast %134 : vector<1x1x1x16x16xf32> to vector<16x16xf32>
    %136 = tpu.concatenate %135, %1 in 1 : vector<16x16xf32>, vector<16x112xf32> -> vector<16x128xf32>
    %137 = tpu.concatenate %0, %136, %0 in 0 : vector<1x128xf32>, vector<16x128xf32>, vector<1x128xf32> -> vector<18x128xf32>
    %138 = vector.extract_strided_slice %137 {offsets = [0, 0], sizes = [18, 127], strides = [1, 1]} : vector<18x128xf32> to vector<18x127xf32>
    %139 = tpu.concatenate %2, %138 in 1 : vector<18x1xf32>, vector<18x127xf32> -> vector<18x128xf32>
    %140 = vector.extract_strided_slice %137 {offsets = [0, 1], sizes = [18, 127], strides = [1, 1]} : vector<18x128xf32> to vector<18x127xf32>
    %141 = tpu.concatenate %140, %2 in 1 : vector<18x127xf32>, vector<18x1xf32> -> vector<18x128xf32>
    %142 = vector.extract_strided_slice %139 {offsets = [0, 0], sizes = [16, 128], strides = [1, 1]} : vector<18x128xf32> to vector<16x128xf32>
    %c9 = arith.constant 9 : index
    %143 = memref.load %arg1[%c9] : memref<81xf32, #tpu.memory_space<smem>>
    %144 = vector.broadcast %143 : f32 to vector<16x128xf32>
    %145 = arith.mulf %144, %142 : vector<16x128xf32>
    %146 = arith.addf %125, %145 : vector<16x128xf32>
    %c36 = arith.constant 36 : index
    %147 = memref.load %arg1[%c36] : memref<81xf32, #tpu.memory_space<smem>>
    %148 = vector.broadcast %147 : f32 to vector<16x128xf32>
    %149 = arith.mulf %148, %142 : vector<16x128xf32>
    %150 = arith.addf %129, %149 : vector<16x128xf32>
    %c63 = arith.constant 63 : index
    %151 = memref.load %arg1[%c63] : memref<81xf32, #tpu.memory_space<smem>>
    %152 = vector.broadcast %151 : f32 to vector<16x128xf32>
    %153 = arith.mulf %152, %142 : vector<16x128xf32>
    %154 = arith.addf %133, %153 : vector<16x128xf32>
    %155 = vector.extract_strided_slice %137 {offsets = [0, 0], sizes = [16, 128], strides = [1, 1]} : vector<18x128xf32> to vector<16x128xf32>
    %c10 = arith.constant 10 : index
    %156 = memref.load %arg1[%c10] : memref<81xf32, #tpu.memory_space<smem>>
    %157 = vector.broadcast %156 : f32 to vector<16x128xf32>
    %158 = arith.mulf %157, %155 : vector<16x128xf32>
    %159 = arith.addf %146, %158 : vector<16x128xf32>
    %c37 = arith.constant 37 : index
    %160 = memref.load %arg1[%c37] : memref<81xf32, #tpu.memory_space<smem>>
    %161 = vector.broadcast %160 : f32 to vector<16x128xf32>
    %162 = arith.mulf %161, %155 : vector<16x128xf32>
    %163 = arith.addf %150, %162 : vector<16x128xf32>
    %c64 = arith.constant 64 : index
    %164 = memref.load %arg1[%c64] : memref<81xf32, #tpu.memory_space<smem>>
    %165 = vector.broadcast %164 : f32 to vector<16x128xf32>
    %166 = arith.mulf %165, %155 : vector<16x128xf32>
    %167 = arith.addf %154, %166 : vector<16x128xf32>
    %168 = vector.extract_strided_slice %141 {offsets = [0, 0], sizes = [16, 128], strides = [1, 1]} : vector<18x128xf32> to vector<16x128xf32>
    %c11 = arith.constant 11 : index
    %169 = memref.load %arg1[%c11] : memref<81xf32, #tpu.memory_space<smem>>
    %170 = vector.broadcast %169 : f32 to vector<16x128xf32>
    %171 = arith.mulf %170, %168 : vector<16x128xf32>
    %172 = arith.addf %159, %171 : vector<16x128xf32>
    %c38 = arith.constant 38 : index
    %173 = memref.load %arg1[%c38] : memref<81xf32, #tpu.memory_space<smem>>
    %174 = vector.broadcast %173 : f32 to vector<16x128xf32>
    %175 = arith.mulf %174, %168 : vector<16x128xf32>
    %176 = arith.addf %163, %175 : vector<16x128xf32>
    %c65 = arith.constant 65 : index
    %177 = memref.load %arg1[%c65] : memref<81xf32, #tpu.memory_space<smem>>
    %178 = vector.broadcast %177 : f32 to vector<16x128xf32>
    %179 = arith.mulf %178, %168 : vector<16x128xf32>
    %180 = arith.addf %167, %179 : vector<16x128xf32>
    %181 = vector.extract_strided_slice %139 {offsets = [1, 0], sizes = [16, 128], strides = [1, 1]} : vector<18x128xf32> to vector<16x128xf32>
    %c12 = arith.constant 12 : index
    %182 = memref.load %arg1[%c12] : memref<81xf32, #tpu.memory_space<smem>>
    %183 = vector.broadcast %182 : f32 to vector<16x128xf32>
    %184 = arith.mulf %183, %181 : vector<16x128xf32>
    %185 = arith.addf %172, %184 : vector<16x128xf32>
    %c39 = arith.constant 39 : index
    %186 = memref.load %arg1[%c39] : memref<81xf32, #tpu.memory_space<smem>>
    %187 = vector.broadcast %186 : f32 to vector<16x128xf32>
    %188 = arith.mulf %187, %181 : vector<16x128xf32>
    %189 = arith.addf %176, %188 : vector<16x128xf32>
    %c66 = arith.constant 66 : index
    %190 = memref.load %arg1[%c66] : memref<81xf32, #tpu.memory_space<smem>>
    %191 = vector.broadcast %190 : f32 to vector<16x128xf32>
    %192 = arith.mulf %191, %181 : vector<16x128xf32>
    %193 = arith.addf %180, %192 : vector<16x128xf32>
    %194 = vector.extract_strided_slice %137 {offsets = [1, 0], sizes = [16, 128], strides = [1, 1]} : vector<18x128xf32> to vector<16x128xf32>
    %c13 = arith.constant 13 : index
    %195 = memref.load %arg1[%c13] : memref<81xf32, #tpu.memory_space<smem>>
    %196 = vector.broadcast %195 : f32 to vector<16x128xf32>
    %197 = arith.mulf %196, %194 : vector<16x128xf32>
    %198 = arith.addf %185, %197 : vector<16x128xf32>
    %c40 = arith.constant 40 : index
    %199 = memref.load %arg1[%c40] : memref<81xf32, #tpu.memory_space<smem>>
    %200 = vector.broadcast %199 : f32 to vector<16x128xf32>
    %201 = arith.mulf %200, %194 : vector<16x128xf32>
    %202 = arith.addf %189, %201 : vector<16x128xf32>
    %c67 = arith.constant 67 : index
    %203 = memref.load %arg1[%c67] : memref<81xf32, #tpu.memory_space<smem>>
    %204 = vector.broadcast %203 : f32 to vector<16x128xf32>
    %205 = arith.mulf %204, %194 : vector<16x128xf32>
    %206 = arith.addf %193, %205 : vector<16x128xf32>
    %207 = vector.extract_strided_slice %141 {offsets = [1, 0], sizes = [16, 128], strides = [1, 1]} : vector<18x128xf32> to vector<16x128xf32>
    %c14 = arith.constant 14 : index
    %208 = memref.load %arg1[%c14] : memref<81xf32, #tpu.memory_space<smem>>
    %209 = vector.broadcast %208 : f32 to vector<16x128xf32>
    %210 = arith.mulf %209, %207 : vector<16x128xf32>
    %211 = arith.addf %198, %210 : vector<16x128xf32>
    %c41 = arith.constant 41 : index
    %212 = memref.load %arg1[%c41] : memref<81xf32, #tpu.memory_space<smem>>
    %213 = vector.broadcast %212 : f32 to vector<16x128xf32>
    %214 = arith.mulf %213, %207 : vector<16x128xf32>
    %215 = arith.addf %202, %214 : vector<16x128xf32>
    %c68 = arith.constant 68 : index
    %216 = memref.load %arg1[%c68] : memref<81xf32, #tpu.memory_space<smem>>
    %217 = vector.broadcast %216 : f32 to vector<16x128xf32>
    %218 = arith.mulf %217, %207 : vector<16x128xf32>
    %219 = arith.addf %206, %218 : vector<16x128xf32>
    %220 = vector.extract_strided_slice %139 {offsets = [2, 0], sizes = [16, 128], strides = [1, 1]} : vector<18x128xf32> to vector<16x128xf32>
    %c15 = arith.constant 15 : index
    %221 = memref.load %arg1[%c15] : memref<81xf32, #tpu.memory_space<smem>>
    %222 = vector.broadcast %221 : f32 to vector<16x128xf32>
    %223 = arith.mulf %222, %220 : vector<16x128xf32>
    %224 = arith.addf %211, %223 : vector<16x128xf32>
    %c42 = arith.constant 42 : index
    %225 = memref.load %arg1[%c42] : memref<81xf32, #tpu.memory_space<smem>>
    %226 = vector.broadcast %225 : f32 to vector<16x128xf32>
    %227 = arith.mulf %226, %220 : vector<16x128xf32>
    %228 = arith.addf %215, %227 : vector<16x128xf32>
    %c69 = arith.constant 69 : index
    %229 = memref.load %arg1[%c69] : memref<81xf32, #tpu.memory_space<smem>>
    %230 = vector.broadcast %229 : f32 to vector<16x128xf32>
    %231 = arith.mulf %230, %220 : vector<16x128xf32>
    %232 = arith.addf %219, %231 : vector<16x128xf32>
    %233 = vector.extract_strided_slice %137 {offsets = [2, 0], sizes = [16, 128], strides = [1, 1]} : vector<18x128xf32> to vector<16x128xf32>
    %c16 = arith.constant 16 : index
    %234 = memref.load %arg1[%c16] : memref<81xf32, #tpu.memory_space<smem>>
    %235 = vector.broadcast %234 : f32 to vector<16x128xf32>
    %236 = arith.mulf %235, %233 : vector<16x128xf32>
    %237 = arith.addf %224, %236 : vector<16x128xf32>
    %c43 = arith.constant 43 : index
    %238 = memref.load %arg1[%c43] : memref<81xf32, #tpu.memory_space<smem>>
    %239 = vector.broadcast %238 : f32 to vector<16x128xf32>
    %240 = arith.mulf %239, %233 : vector<16x128xf32>
    %241 = arith.addf %228, %240 : vector<16x128xf32>
    %c70 = arith.constant 70 : index
    %242 = memref.load %arg1[%c70] : memref<81xf32, #tpu.memory_space<smem>>
    %243 = vector.broadcast %242 : f32 to vector<16x128xf32>
    %244 = arith.mulf %243, %233 : vector<16x128xf32>
    %245 = arith.addf %232, %244 : vector<16x128xf32>
    %246 = vector.extract_strided_slice %141 {offsets = [2, 0], sizes = [16, 128], strides = [1, 1]} : vector<18x128xf32> to vector<16x128xf32>
    %c17 = arith.constant 17 : index
    %247 = memref.load %arg1[%c17] : memref<81xf32, #tpu.memory_space<smem>>
    %248 = vector.broadcast %247 : f32 to vector<16x128xf32>
    %249 = arith.mulf %248, %246 : vector<16x128xf32>
    %250 = arith.addf %237, %249 : vector<16x128xf32>
    %c44 = arith.constant 44 : index
    %251 = memref.load %arg1[%c44] : memref<81xf32, #tpu.memory_space<smem>>
    %252 = vector.broadcast %251 : f32 to vector<16x128xf32>
    %253 = arith.mulf %252, %246 : vector<16x128xf32>
    %254 = arith.addf %241, %253 : vector<16x128xf32>
    %c71 = arith.constant 71 : index
    %255 = memref.load %arg1[%c71] : memref<81xf32, #tpu.memory_space<smem>>
    %256 = vector.broadcast %255 : f32 to vector<16x128xf32>
    %257 = arith.mulf %256, %246 : vector<16x128xf32>
    %258 = arith.addf %245, %257 : vector<16x128xf32>
    %c0_15 = arith.constant 0 : index
    %c0_16 = arith.constant 0 : index
    %c2_17 = arith.constant 2 : index
    %c0_18 = arith.constant 0 : index
    %c0_19 = arith.constant 0 : index
    %259 = vector.load %arg3[%c0_15, %c0_16, %c2_17, %c0_18, %c0_19] : memref<1x1x3x16x16xf32, #tpu.memory_space<vmem>>, vector<1x1x1x16x16xf32>
    %260 = vector.shape_cast %259 : vector<1x1x1x16x16xf32> to vector<16x16xf32>
    %261 = tpu.concatenate %260, %1 in 1 : vector<16x16xf32>, vector<16x112xf32> -> vector<16x128xf32>
    %262 = tpu.concatenate %0, %261, %0 in 0 : vector<1x128xf32>, vector<16x128xf32>, vector<1x128xf32> -> vector<18x128xf32>
    %263 = vector.extract_strided_slice %262 {offsets = [0, 0], sizes = [18, 127], strides = [1, 1]} : vector<18x128xf32> to vector<18x127xf32>
    %264 = tpu.concatenate %2, %263 in 1 : vector<18x1xf32>, vector<18x127xf32> -> vector<18x128xf32>
    %265 = vector.extract_strided_slice %262 {offsets = [0, 1], sizes = [18, 127], strides = [1, 1]} : vector<18x128xf32> to vector<18x127xf32>
    %266 = tpu.concatenate %265, %2 in 1 : vector<18x127xf32>, vector<18x1xf32> -> vector<18x128xf32>
    %267 = vector.extract_strided_slice %264 {offsets = [0, 0], sizes = [16, 128], strides = [1, 1]} : vector<18x128xf32> to vector<16x128xf32>
    %c18 = arith.constant 18 : index
    %268 = memref.load %arg1[%c18] : memref<81xf32, #tpu.memory_space<smem>>
    %269 = vector.broadcast %268 : f32 to vector<16x128xf32>
    %270 = arith.mulf %269, %267 : vector<16x128xf32>
    %271 = arith.addf %250, %270 : vector<16x128xf32>
    %c45 = arith.constant 45 : index
    %272 = memref.load %arg1[%c45] : memref<81xf32, #tpu.memory_space<smem>>
    %273 = vector.broadcast %272 : f32 to vector<16x128xf32>
    %274 = arith.mulf %273, %267 : vector<16x128xf32>
    %275 = arith.addf %254, %274 : vector<16x128xf32>
    %c72 = arith.constant 72 : index
    %276 = memref.load %arg1[%c72] : memref<81xf32, #tpu.memory_space<smem>>
    %277 = vector.broadcast %276 : f32 to vector<16x128xf32>
    %278 = arith.mulf %277, %267 : vector<16x128xf32>
    %279 = arith.addf %258, %278 : vector<16x128xf32>
    %280 = vector.extract_strided_slice %262 {offsets = [0, 0], sizes = [16, 128], strides = [1, 1]} : vector<18x128xf32> to vector<16x128xf32>
    %c19 = arith.constant 19 : index
    %281 = memref.load %arg1[%c19] : memref<81xf32, #tpu.memory_space<smem>>
    %282 = vector.broadcast %281 : f32 to vector<16x128xf32>
    %283 = arith.mulf %282, %280 : vector<16x128xf32>
    %284 = arith.addf %271, %283 : vector<16x128xf32>
    %c46 = arith.constant 46 : index
    %285 = memref.load %arg1[%c46] : memref<81xf32, #tpu.memory_space<smem>>
    %286 = vector.broadcast %285 : f32 to vector<16x128xf32>
    %287 = arith.mulf %286, %280 : vector<16x128xf32>
    %288 = arith.addf %275, %287 : vector<16x128xf32>
    %c73 = arith.constant 73 : index
    %289 = memref.load %arg1[%c73] : memref<81xf32, #tpu.memory_space<smem>>
    %290 = vector.broadcast %289 : f32 to vector<16x128xf32>
    %291 = arith.mulf %290, %280 : vector<16x128xf32>
    %292 = arith.addf %279, %291 : vector<16x128xf32>
    %293 = vector.extract_strided_slice %266 {offsets = [0, 0], sizes = [16, 128], strides = [1, 1]} : vector<18x128xf32> to vector<16x128xf32>
    %c20 = arith.constant 20 : index
    %294 = memref.load %arg1[%c20] : memref<81xf32, #tpu.memory_space<smem>>
    %295 = vector.broadcast %294 : f32 to vector<16x128xf32>
    %296 = arith.mulf %295, %293 : vector<16x128xf32>
    %297 = arith.addf %284, %296 : vector<16x128xf32>
    %c47 = arith.constant 47 : index
    %298 = memref.load %arg1[%c47] : memref<81xf32, #tpu.memory_space<smem>>
    %299 = vector.broadcast %298 : f32 to vector<16x128xf32>
    %300 = arith.mulf %299, %293 : vector<16x128xf32>
    %301 = arith.addf %288, %300 : vector<16x128xf32>
    %c74 = arith.constant 74 : index
    %302 = memref.load %arg1[%c74] : memref<81xf32, #tpu.memory_space<smem>>
    %303 = vector.broadcast %302 : f32 to vector<16x128xf32>
    %304 = arith.mulf %303, %293 : vector<16x128xf32>
    %305 = arith.addf %292, %304 : vector<16x128xf32>
    %306 = vector.extract_strided_slice %264 {offsets = [1, 0], sizes = [16, 128], strides = [1, 1]} : vector<18x128xf32> to vector<16x128xf32>
    %c21 = arith.constant 21 : index
    %307 = memref.load %arg1[%c21] : memref<81xf32, #tpu.memory_space<smem>>
    %308 = vector.broadcast %307 : f32 to vector<16x128xf32>
    %309 = arith.mulf %308, %306 : vector<16x128xf32>
    %310 = arith.addf %297, %309 : vector<16x128xf32>
    %c48 = arith.constant 48 : index
    %311 = memref.load %arg1[%c48] : memref<81xf32, #tpu.memory_space<smem>>
    %312 = vector.broadcast %311 : f32 to vector<16x128xf32>
    %313 = arith.mulf %312, %306 : vector<16x128xf32>
    %314 = arith.addf %301, %313 : vector<16x128xf32>
    %c75 = arith.constant 75 : index
    %315 = memref.load %arg1[%c75] : memref<81xf32, #tpu.memory_space<smem>>
    %316 = vector.broadcast %315 : f32 to vector<16x128xf32>
    %317 = arith.mulf %316, %306 : vector<16x128xf32>
    %318 = arith.addf %305, %317 : vector<16x128xf32>
    %319 = vector.extract_strided_slice %262 {offsets = [1, 0], sizes = [16, 128], strides = [1, 1]} : vector<18x128xf32> to vector<16x128xf32>
    %c22 = arith.constant 22 : index
    %320 = memref.load %arg1[%c22] : memref<81xf32, #tpu.memory_space<smem>>
    %321 = vector.broadcast %320 : f32 to vector<16x128xf32>
    %322 = arith.mulf %321, %319 : vector<16x128xf32>
    %323 = arith.addf %310, %322 : vector<16x128xf32>
    %c49 = arith.constant 49 : index
    %324 = memref.load %arg1[%c49] : memref<81xf32, #tpu.memory_space<smem>>
    %325 = vector.broadcast %324 : f32 to vector<16x128xf32>
    %326 = arith.mulf %325, %319 : vector<16x128xf32>
    %327 = arith.addf %314, %326 : vector<16x128xf32>
    %c76 = arith.constant 76 : index
    %328 = memref.load %arg1[%c76] : memref<81xf32, #tpu.memory_space<smem>>
    %329 = vector.broadcast %328 : f32 to vector<16x128xf32>
    %330 = arith.mulf %329, %319 : vector<16x128xf32>
    %331 = arith.addf %318, %330 : vector<16x128xf32>
    %332 = vector.extract_strided_slice %266 {offsets = [1, 0], sizes = [16, 128], strides = [1, 1]} : vector<18x128xf32> to vector<16x128xf32>
    %c23 = arith.constant 23 : index
    %333 = memref.load %arg1[%c23] : memref<81xf32, #tpu.memory_space<smem>>
    %334 = vector.broadcast %333 : f32 to vector<16x128xf32>
    %335 = arith.mulf %334, %332 : vector<16x128xf32>
    %336 = arith.addf %323, %335 : vector<16x128xf32>
    %c50 = arith.constant 50 : index
    %337 = memref.load %arg1[%c50] : memref<81xf32, #tpu.memory_space<smem>>
    %338 = vector.broadcast %337 : f32 to vector<16x128xf32>
    %339 = arith.mulf %338, %332 : vector<16x128xf32>
    %340 = arith.addf %327, %339 : vector<16x128xf32>
    %c77 = arith.constant 77 : index
    %341 = memref.load %arg1[%c77] : memref<81xf32, #tpu.memory_space<smem>>
    %342 = vector.broadcast %341 : f32 to vector<16x128xf32>
    %343 = arith.mulf %342, %332 : vector<16x128xf32>
    %344 = arith.addf %331, %343 : vector<16x128xf32>
    %345 = vector.extract_strided_slice %264 {offsets = [2, 0], sizes = [16, 128], strides = [1, 1]} : vector<18x128xf32> to vector<16x128xf32>
    %c24 = arith.constant 24 : index
    %346 = memref.load %arg1[%c24] : memref<81xf32, #tpu.memory_space<smem>>
    %347 = vector.broadcast %346 : f32 to vector<16x128xf32>
    %348 = arith.mulf %347, %345 : vector<16x128xf32>
    %349 = arith.addf %336, %348 : vector<16x128xf32>
    %c51 = arith.constant 51 : index
    %350 = memref.load %arg1[%c51] : memref<81xf32, #tpu.memory_space<smem>>
    %351 = vector.broadcast %350 : f32 to vector<16x128xf32>
    %352 = arith.mulf %351, %345 : vector<16x128xf32>
    %353 = arith.addf %340, %352 : vector<16x128xf32>
    %c78 = arith.constant 78 : index
    %354 = memref.load %arg1[%c78] : memref<81xf32, #tpu.memory_space<smem>>
    %355 = vector.broadcast %354 : f32 to vector<16x128xf32>
    %356 = arith.mulf %355, %345 : vector<16x128xf32>
    %357 = arith.addf %344, %356 : vector<16x128xf32>
    %358 = vector.extract_strided_slice %262 {offsets = [2, 0], sizes = [16, 128], strides = [1, 1]} : vector<18x128xf32> to vector<16x128xf32>
    %c25 = arith.constant 25 : index
    %359 = memref.load %arg1[%c25] : memref<81xf32, #tpu.memory_space<smem>>
    %360 = vector.broadcast %359 : f32 to vector<16x128xf32>
    %361 = arith.mulf %360, %358 : vector<16x128xf32>
    %362 = arith.addf %349, %361 : vector<16x128xf32>
    %c52 = arith.constant 52 : index
    %363 = memref.load %arg1[%c52] : memref<81xf32, #tpu.memory_space<smem>>
    %364 = vector.broadcast %363 : f32 to vector<16x128xf32>
    %365 = arith.mulf %364, %358 : vector<16x128xf32>
    %366 = arith.addf %353, %365 : vector<16x128xf32>
    %c79 = arith.constant 79 : index
    %367 = memref.load %arg1[%c79] : memref<81xf32, #tpu.memory_space<smem>>
    %368 = vector.broadcast %367 : f32 to vector<16x128xf32>
    %369 = arith.mulf %368, %358 : vector<16x128xf32>
    %370 = arith.addf %357, %369 : vector<16x128xf32>
    %371 = vector.extract_strided_slice %266 {offsets = [2, 0], sizes = [16, 128], strides = [1, 1]} : vector<18x128xf32> to vector<16x128xf32>
    %c26 = arith.constant 26 : index
    %372 = memref.load %arg1[%c26] : memref<81xf32, #tpu.memory_space<smem>>
    %373 = vector.broadcast %372 : f32 to vector<16x128xf32>
    %374 = arith.mulf %373, %371 : vector<16x128xf32>
    %375 = arith.addf %362, %374 : vector<16x128xf32>
    %c53 = arith.constant 53 : index
    %376 = memref.load %arg1[%c53] : memref<81xf32, #tpu.memory_space<smem>>
    %377 = vector.broadcast %376 : f32 to vector<16x128xf32>
    %378 = arith.mulf %377, %371 : vector<16x128xf32>
    %379 = arith.addf %366, %378 : vector<16x128xf32>
    %c80 = arith.constant 80 : index
    %380 = memref.load %arg1[%c80] : memref<81xf32, #tpu.memory_space<smem>>
    %381 = vector.broadcast %380 : f32 to vector<16x128xf32>
    %382 = arith.mulf %381, %371 : vector<16x128xf32>
    %383 = arith.addf %370, %382 : vector<16x128xf32>
    %c0_20 = arith.constant 0 : index
    %c0_21 = arith.constant 0 : index
    %c0_22 = arith.constant 0 : index
    %c0_23 = arith.constant 0 : index
    %384 = vector.load %arg4[%c0_20, %c0_21, %c0_22, %c0_23] : memref<1x3x16x128xf32, #tpu.memory_space<vmem>>, vector<1x1x16x128xf32>
    %385 = vector.shape_cast %384 : vector<1x1x16x128xf32> to vector<16x128xf32>
    %386 = vector.shape_cast %375 : vector<16x128xf32> to vector<1x1x16x128xf32>
    tpu.vector_store %arg4[%c0_20, %c0_21, %c0_22, %c0_23], %386 {strides = array<i32>} : memref<1x3x16x128xf32, #tpu.memory_space<vmem>>, vector<1x1x16x128xf32>,
    %c0_24 = arith.constant 0 : index
    %c1_25 = arith.constant 1 : index
    %c0_26 = arith.constant 0 : index
    %c0_27 = arith.constant 0 : index
    %387 = vector.load %arg4[%c0_24, %c1_25, %c0_26, %c0_27] : memref<1x3x16x128xf32, #tpu.memory_space<vmem>>, vector<1x1x16x128xf32>
    %388 = vector.shape_cast %387 : vector<1x1x16x128xf32> to vector<16x128xf32>
    %389 = vector.shape_cast %379 : vector<16x128xf32> to vector<1x1x16x128xf32>
    tpu.vector_store %arg4[%c0_24, %c1_25, %c0_26, %c0_27], %389 {strides = array<i32>} : memref<1x3x16x128xf32, #tpu.memory_space<vmem>>, vector<1x1x16x128xf32>,
    %c0_28 = arith.constant 0 : index
    %c2_29 = arith.constant 2 : index
    %c0_30 = arith.constant 0 : index
    %c0_31 = arith.constant 0 : index
    %390 = vector.load %arg4[%c0_28, %c2_29, %c0_30, %c0_31] : memref<1x3x16x128xf32, #tpu.memory_space<vmem>>, vector<1x1x16x128xf32>
    %391 = vector.shape_cast %390 : vector<1x1x16x128xf32> to vector<16x128xf32>
    %392 = vector.shape_cast %383 : vector<16x128xf32> to vector<1x1x16x128xf32>
    tpu.vector_store %arg4[%c0_28, %c2_29, %c0_30, %c0_31], %392 {strides = array<i32>} : memref<1x3x16x128xf32, #tpu.memory_space<vmem>>, vector<1x1x16x128xf32>,
    return
  }
  func.func @transform_0(%arg0: i32, %arg1: memref<81xf32, #tpu.memory_space<smem>>, %arg2: memref<3xf32, #tpu.memory_space<smem>>) -> (i32, i32, i32, i32, i32) {
    %c0_i32 = arith.constant 0 : i32
    %c0_i32_0 = arith.constant 0 : i32
    %c0_i32_1 = arith.constant 0 : i32
    %c0_i32_2 = arith.constant 0 : i32
    %c0_i32_3 = arith.constant 0 : i32
    return %arg0, %c0_i32, %c0_i32_0, %c0_i32_1, %c0_i32_2 : i32, i32, i32, i32, i32
  }
  func.func @transform_1(%arg0: i32, %arg1: memref<81xf32, #tpu.memory_space<smem>>, %arg2: memref<3xf32, #tpu.memory_space<smem>>) -> (i32, i32, i32, i32) {
    %c0_i32 = arith.constant 0 : i32
    %c0_i32_0 = arith.constant 0 : i32
    %c0_i32_1 = arith.constant 0 : i32
    %c0_i32_2 = arith.constant 0 : i32
    return %arg0, %c0_i32, %c0_i32_0, %c0_i32_1 : i32, i32, i32, i32
  }
}

</mosaic_0001>

<llo_original>
// kernel: interpolate_example_forward.1
$region0: #{interpolate_example_forward.1}
  #allocation0 [shape = 'u32[]', space=smem, size = 0x4, offset = 0x4, fixed_abs, tag = 'smem constant byte address 0x4 - core index']
  #allocation1 [shape = 'u32[144,128]{1,0:T(1,128)}', space=vmem, size = 0x12000, scoped, tag = 'internal scratch']
  #allocation2 [shape = 's32[1]{0}', space=sflag, size = 0x4, scoped, tag = 'scoped memory for interpolate_example_forward.1']
  #allocation3 [shape = 'u8[512]{0}', space=smem, size = 0x200, scoped, tag = 'prefetched SMEM operand 0']
  #allocation4 [shape = 'u8[512]{0}', space=smem, size = 0x200, scoped, tag = 'prefetched SMEM operand 1']
  %s0 = inlined_call_operand.vmem [shape: f32[81], index: 0, kind: input, shape index: {}]
  %s1 = inlined_call_operand.vmem [shape: f32[3], index: 1, kind: input, shape index: {}]
  %s2 = inlined_call_operand.hbm [shape: f32[2,5,3,16,16], index: 2, kind: input, shape index: {}]
  %s3 = inlined_call_operand.hbm [shape: f32[2,3,16,128], index: 3, kind: output, shape index: {}]
  %s4 = sld [smem:[#allocation0]]
  $region41: #{interpolate_example_forward.1} parent=0
    _
  %s6 = ssub.s32 1, %s4
  %s7 = scalar_select 0, %s6, %s4
  %s8 = sshll.u32 %s0, 4
  %s9 = int_to_ptr.vmem [resolvable:$true] %s8
  %11 = dma.vmem_to_smem %s9, 16, [#allocation3], [#allocation2]
  %s12 = sshll.u32 %s1, 4
  %s13 = int_to_ptr.vmem [resolvable:$true] %s12
  %15 = dma.vmem_to_smem %s13, 16, [#allocation4], [#allocation2]
  %16 = dma.done [#allocation2], 32
  %17 = sfence
  $region1: #{interpolate_example_forward.1} parent=0
    #allocation5 [shape = 'u8[49152]{0}', space=vmem, size = 0xc000, scoped, tag = 'input window, operand 2']
    #allocation6 [shape = 's32[2]{0}', space=sflag, size = 0x8, scoped, tag = 'scoped memory for interpolate_example_forward.1']
    #allocation7 [shape = 's32[2]{0}', space=sflag, size = 0x8, scoped, tag = 'scoped memory for interpolate_example_forward.1']
    #allocation8 [shape = 'u8[49152]{0}', space=vmem, size = 0xc000, scoped, tag = 'output window, operand 0']
    %18 = vsyncpa [#allocation6], 0
    %s19 = scalar_lea.sflag [#allocation6], 1
    %20 = vsyncpa %s19, 0
    %21 = vsyncpa [#allocation7], 0
    %s22 = scalar_lea.sflag [#allocation7], 1
    %23 = vsyncpa %s22, 0
    loop: start=0, step=1, limit=4
    $region2: #{interpolate_example_forward.1} parent=1 // loop_pre_header
      _
    $region3: #{interpolate_example_forward.1} parent=1 // loop_header
      %s25 = sphi 0, %s29
      %p26 = scmp.ge.s32.totalorder %s25, 4
      %s35 = sphi 0, %s37
      %s38 = sphi 0, %s35
      %s39 = sphi 0, %s38
      %s55 = sphi 0, %s39
      %s61 = sphi 0, %s63
      %s64 = sphi 0, %s61
      %s65 = sphi 0, %s64
      %s81 = sphi 0, %s65
    $region4: #{interpolate_example_forward.1} parent=1 // loop_header_branch
      %28 = sbr.rel (%p26) target = $region8
    $region5: #{interpolate_example_forward.1} parent=1 // loop_body
      %s30 = ssub.s32 %s25, 1
      %s31 = ssub.s32 %s25, 2
      %s32 = sadd.s32 %s25, 1
      %s33 = ssub.s32 %s25, %s32
      %p34 = scmp.eq.s32.totalorder %s33, 0
      %s36 = sadd.s32 %s35, 1
      %s37 = scalar_select %p34, %s35, %s36
      %p40 = pneg %p34
      %p41 = scmp.eq.s32.totalorder %s25, 1
      %p42 = por %p40, %p41
      %p43 = scmp.ne.s32.totalorder %s35, %s38
      %p44 = scmp.eq.s32.totalorder %s25, 0
      %p45 = por %p43, %p44
      %p46 = scmp.ne.s32.totalorder %s35, %s38
      %p47 = scmp.eq.s32.totalorder %s30, 1
      %p48 = por %p46, %p47
      %p49 = scmp.ne.s32.totalorder %s38, %s39
      %p50 = scmp.eq.s32.totalorder %s30, 0
      %p51 = por %p49, %p50
      %p52 = scmp.ne.s32.totalorder %s38, %s39
      %p53 = scmp.eq.s32.totalorder %s31, 1
      %p54 = por %p52, %p53
      %p56 = scmp.ne.s32.totalorder %s39, %s55
      %p57 = scmp.eq.s32.totalorder %s31, 0
      %p58 = por %p56, %p57
      %s59 = ssub.s32 %s25, %s32
      %p60 = scmp.eq.s32.totalorder %s59, 0
      %s62 = sadd.s32 %s61, 1
      %s63 = scalar_select %p60, %s61, %s62
      %p66 = pneg %p60
      %p67 = scmp.eq.s32.totalorder %s25, 1
      %p68 = por %p66, %p67
      %p69 = scmp.ne.s32.totalorder %s61, %s64
      %p70 = scmp.eq.s32.totalorder %s25, 0
      %p71 = por %p69, %p70
      %p72 = scmp.ne.s32.totalorder %s61, %s64
      %p73 = scmp.eq.s32.totalorder %s30, 1
      %p74 = por %p72, %p73
      %p75 = scmp.ne.s32.totalorder %s64, %s65
      %p76 = scmp.eq.s32.totalorder %s30, 0
      %p77 = por %p75, %p76
      %p78 = scmp.ne.s32.totalorder %s64, %s65
      %p79 = scmp.eq.s32.totalorder %s31, 1
      %p80 = por %p78, %p79
      %p82 = scmp.ne.s32.totalorder %s65, %s81
      %p83 = scmp.eq.s32.totalorder %s31, 0
      %p84 = por %p82, %p83
      %p85 = scmp.le.s32.totalorder 1, %s25
      %p86 = scmp.lt.s32.totalorder %s25, 3
      %p87 = pnand %p85, %p86
      %p88 = pneg %p87
      // Predicated region
      $region9: #{interpolate_example_forward.1} parent=5 // pred_check
        _
      $region10: #{interpolate_example_forward.1} parent=5 // pred_check_branch
        %90 = sbr.rel (%p87) target = $region12
      $region11: #{interpolate_example_forward.1} parent=5 // pred_region
        %s91 = ssub.s32 %s25, 1
      $region12: #{interpolate_example_forward.1} parent=5 // pred_fallthru
        _
      %p92 = scmp.lt.s32.totalorder %s25, 2
      // Predicated region
      $region13: #{interpolate_example_forward.1} parent=5 // pred_check
        %p93 = pneg %p92
      $region14: #{interpolate_example_forward.1} parent=5 // pred_check_branch
        %95 = sbr.rel (%p93) target = $region16
      $region15: #{interpolate_example_forward.1} parent=5 // pred_region
        // Predicated region
        $region17: #{interpolate_example_forward.1} parent=15 // pred_check
          %p96 = pneg %p45
        $region18: #{interpolate_example_forward.1} parent=15 // pred_check_branch
          %98 = sbr.rel (%p96) target = $region20
        $region19: #{interpolate_example_forward.1} parent=15 // pred_region
          %s99 = sand.u32 %s35, 1
          %s100 = scalar_lea.sflag [#allocation6], %s99
          %s101 = sand.u32 %s35, 1
          %s102 = smul.addr %s101, 48
          %s103 = scalar_lea.vmem [#allocation5], %s102
          %s105 = ssub.s32 768, 768
          %106 = vsyncadd %s100, %s105
          %s107 = smul.addr %s25, 30
          %s108 = smul.addr %s107, 128
          %s109 = scalar_lea.hbm %s2, %s108
          %s110 = sshll.u32 %s103, 4
          %s111 = int_to_ptr.vmem [resolvable:$true] %s110
          %116 = dma.hbm_to_vmem [thread:$0]  %s109, 768, %s111, %s100, 128, 128, 8
        $region20: #{interpolate_example_forward.1} parent=15 // pred_fallthru
          _
      $region16: #{interpolate_example_forward.1} parent=5 // pred_fallthru
        _
      %p117 = scmp.le.s32.totalorder 1, %s25
      %p118 = scmp.lt.s32.totalorder %s25, 3
      %p119 = pnand %p117, %p118
      %p120 = pneg %p119
      // Predicated region
      $region21: #{interpolate_example_forward.1} parent=5 // pred_check
        _
      $region22: #{interpolate_example_forward.1} parent=5 // pred_check_branch
        %122 = sbr.rel (%p119) target = $region24
      $region23: #{interpolate_example_forward.1} parent=5 // pred_region
        %s123 = ssub.s32 %s25, 1
        %s124 = sand.u32 %s38, 1
        %s125 = scalar_lea.sflag [#allocation6], %s124
        %s126 = sand.u32 %s38, 1
        %s127 = smul.addr %s126, 48
        %s128 = scalar_lea.vmem [#allocation5], %s127
        // Predicated region
        $region25: #{interpolate_example_forward.1} parent=23 // pred_check
          %p129 = pneg %p51
        $region26: #{interpolate_example_forward.1} parent=23 // pred_check_branch
          %131 = sbr.rel (%p129) target = $region28
        $region27: #{interpolate_example_forward.1} parent=23 // pred_region
          %132 = dma.done %s125, 768
        $region28: #{interpolate_example_forward.1} parent=23 // pred_fallthru
          _
        %s133 = sand.u32 %s38, 1
        %s134 = scalar_lea.sflag [#allocation6], %s133
        %s135 = sand.u32 %s38, 1
        %s136 = smul.addr %s135, 48
        %s137 = scalar_lea.vmem [#allocation5], %s136
        %p138 = pneg %p51
        %p139 = pneg %p48
        %p140 = pneg %p77
        %p141 = pneg %p74
        %s142 = sand.u32 %s64, 1
        %s143 = scalar_lea.sflag [#allocation7], %s142
        %s144 = sand.u32 %s64, 1
        %s145 = smul.addr %s144, 48
        %s146 = scalar_lea.vmem [#allocation8], %s145
        %s147 = sld [smem:[#allocation4]]
        %v148 = vstv %s147
        %s149 = sld [smem:[#allocation4 + $0x1]]
        %v150 = vstv %s149
        %s151 = sld [smem:[#allocation4 + $0x2]]
        %v152 = vstv %s151
        %v153 = vld [vmem:[%s128] sm:$0xff]
        %v154 = vld [vmem:[%s128 + $0x8] sm:$0xff]
        %vm155 = vcmask 130048
        %v156 = vsel %vm155, %v153, 0.0
        %v157 = vsel %vm155, %v154, 0.0
        %vm160 = vcmask 1040384
        %v161 = vrot.slane %v156, 7
        %v162 = vrot.slane %v157, 7
        %v163 = vsel %vm160, %v161, %v162
        %v167 = vsel %vm160, 0.0, %v161
        %v168 = vsel %vm160, %v162, 0.0
        %171 = vrot.lane.b32.xlu0 %v167, 1
        %v172 = vpop.permute.xlu0 %171
        %173 = vrot.lane.b32.xlu0 %v163, 1
        %v174 = vpop.permute.xlu0 %173
        %175 = vrot.lane.b32.xlu0 %v168, 1
        %v176 = vpop.permute.xlu0 %175
        %vm180 = vcmask 7168
        %v181 = vsel %vm180, 0.0, %v172
        %v182 = vsel %vm180, 0.0, %v174
        %v183 = vsel %vm180, 0.0, %v176
        %184 = vrot.lane.b32.xlu0 %v167, 127
        %v185 = vpop.permute.xlu0 %184
        %186 = vrot.lane.b32.xlu0 %v163, 127
        %v187 = vpop.permute.xlu0 %186
        %188 = vrot.lane.b32.xlu0 %v168, 127
        %v189 = vpop.permute.xlu0 %188
        %vm193 = vcmask 1039360
        %v194 = vsel %vm193, %v185, 0.0
        %v195 = vsel %vm193, %v187, 0.0
        %v196 = vsel %vm193, %v189, 0.0
        %s197 = sld [smem:[#allocation3]]
        %v198 = vstv %s197
        %v199 = vmul.f32 %v198, %v181
        %v200 = vmul.f32 %v198, %v182
        %v201 = vadd.f32 %v148, %v199
        %v202 = vadd.f32 %v148, %v200
        %s203 = sld [smem:[#allocation3 + $0x1b]]
        %v204 = vstv %s203
        %v205 = vmul.f32 %v204, %v181
        %v206 = vmul.f32 %v204, %v182
        %v207 = vadd.f32 %v150, %v205
        %v208 = vadd.f32 %v150, %v206
        %s209 = sld [smem:[#allocation3 + $0x36]]
        %v210 = vstv %s209
        %v211 = vmul.f32 %v210, %v181
        %v212 = vmul.f32 %v210, %v182
        %v213 = vadd.f32 %v152, %v211
        %v214 = vadd.f32 %v152, %v212
        %s215 = sld [smem:[#allocation3 + $0x1]]
        %v216 = vstv %s215
        %v217 = vmul.f32 %v216, %v167
        %v218 = vmul.f32 %v216, %v163
        %v219 = vadd.f32 %v201, %v217
        %v220 = vadd.f32 %v202, %v218
        %s221 = sld [smem:[#allocation3 + $0x1c]]
        %v222 = vstv %s221
        %v223 = vmul.f32 %v222, %v167
        %v224 = vmul.f32 %v222, %v163
        %v225 = vadd.f32 %v207, %v223
        %v226 = vadd.f32 %v208, %v224
        %s227 = sld [smem:[#allocation3 + $0x37]]
        %v228 = vstv %s227
        %v229 = vmul.f32 %v228, %v167
        %v230 = vmul.f32 %v228, %v163
        %v231 = vadd.f32 %v213, %v229
        %v232 = vadd.f32 %v214, %v230
        %s233 = sld [smem:[#allocation3 + $0x2]]
        %v234 = vstv %s233
        %v235 = vmul.f32 %v234, %v194
        %v236 = vmul.f32 %v234, %v195
        %v237 = vadd.f32 %v219, %v235
        %v238 = vadd.f32 %v220, %v236
        %s239 = sld [smem:[#allocation3 + $0x1d]]
        %v240 = vstv %s239
        %v241 = vmul.f32 %v240, %v194
        %v242 = vmul.f32 %v240, %v195
        %v243 = vadd.f32 %v225, %v241
        %v244 = vadd.f32 %v226, %v242
        %s245 = sld [smem:[#allocation3 + $0x38]]
        %v246 = vstv %s245
        %v247 = vmul.f32 %v246, %v194
        %v248 = vmul.f32 %v246, %v195
        %v249 = vadd.f32 %v231, %v247
        %v250 = vadd.f32 %v232, %v248
        %s251 = sld [smem:[#allocation3 + $0x3]]
        %v252 = vstv %s251
        %v253 = vmul.f32 %v252, %v181
        %v254 = vmul.f32 %v252, %v182
        %v255 = vmul.f32 %v252, %v183
        %vm259 = vcmask 1046528
        %v260 = vrot.slane %v253, 1
        %v261 = vrot.slane %v254, 1
        %v262 = vsel %vm259, %v260, %v261
        %v263 = vrot.slane %v255, 1
        %v264 = vsel %vm259, %v261, %v263
        %v267 = vadd.f32 %v237, %v262
        %v268 = vadd.f32 %v238, %v264
        %s269 = sld [smem:[#allocation3 + $0x1e]]
        %v270 = vstv %s269
        %v271 = vmul.f32 %v270, %v181
        %v272 = vmul.f32 %v270, %v182
        %v273 = vmul.f32 %v270, %v183
        %v277 = vrot.slane %v271, 1
        %v278 = vrot.slane %v272, 1
        %v279 = vsel %vm259, %v277, %v278
        %v280 = vrot.slane %v273, 1
        %v281 = vsel %vm259, %v278, %v280
        %v284 = vadd.f32 %v243, %v279
        %v285 = vadd.f32 %v244, %v281
        %s286 = sld [smem:[#allocation3 + $0x39]]
        %v287 = vstv %s286
        %v288 = vmul.f32 %v287, %v181
        %v289 = vmul.f32 %v287, %v182
        %v290 = vmul.f32 %v287, %v183
        %v294 = vrot.slane %v288, 1
        %v295 = vrot.slane %v289, 1
        %v296 = vsel %vm259, %v294, %v295
        %v297 = vrot.slane %v290, 1
        %v298 = vsel %vm259, %v295, %v297
        %v301 = vadd.f32 %v249, %v296
        %v302 = vadd.f32 %v250, %v298
        %s303 = sld [smem:[#allocation3 + $0x4]]
        %v304 = vstv %s303
        %v305 = vmul.f32 %v304, %v167
        %v306 = vmul.f32 %v304, %v163
        %v307 = vmul.f32 %v304, %v168
        %v311 = vrot.slane %v305, 1
        %v312 = vrot.slane %v306, 1
        %v313 = vsel %vm259, %v311, %v312
        %v314 = vrot.slane %v307, 1
        %v315 = vsel %vm259, %v312, %v314
        %v318 = vadd.f32 %v267, %v313
        %v319 = vadd.f32 %v268, %v315
        %s320 = sld [smem:[#allocation3 + $0x1f]]
        %v321 = vstv %s320
        %v322 = vmul.f32 %v321, %v167
        %v323 = vmul.f32 %v321, %v163
        %v324 = vmul.f32 %v321, %v168
        %v328 = vrot.slane %v322, 1
        %v329 = vrot.slane %v323, 1
        %v330 = vsel %vm259, %v328, %v329
        %v331 = vrot.slane %v324, 1
        %v332 = vsel %vm259, %v329, %v331
        %v335 = vadd.f32 %v284, %v330
        %v336 = vadd.f32 %v285, %v332
        %s337 = sld [smem:[#allocation3 + $0x3a]]
        %v338 = vstv %s337
        %v339 = vmul.f32 %v338, %v167
        %v340 = vmul.f32 %v338, %v163
        %v341 = vmul.f32 %v338, %v168
        %v345 = vrot.slane %v339, 1
        %v346 = vrot.slane %v340, 1
        %v347 = vsel %vm259, %v345, %v346
        %v348 = vrot.slane %v341, 1
        %v349 = vsel %vm259, %v346, %v348
        %v352 = vadd.f32 %v301, %v347
        %v353 = vadd.f32 %v302, %v349
        %s354 = sld [smem:[#allocation3 + $0x5]]
        %v355 = vstv %s354
        %v356 = vmul.f32 %v355, %v194
        %v357 = vmul.f32 %v355, %v195
        %v358 = vmul.f32 %v355, %v196
        %v362 = vrot.slane %v356, 1
        %v363 = vrot.slane %v357, 1
        %v364 = vsel %vm259, %v362, %v363
        %v365 = vrot.slane %v358, 1
        %v366 = vsel %vm259, %v363, %v365
        %v369 = vadd.f32 %v318, %v364
        %v370 = vadd.f32 %v319, %v366
        %s371 = sld [smem:[#allocation3 + $0x20]]
        %v372 = vstv %s371
        %v373 = vmul.f32 %v372, %v194
        %v374 = vmul.f32 %v372, %v195
        %v375 = vmul.f32 %v372, %v196
        %v379 = vrot.slane %v373, 1
        %v380 = vrot.slane %v374, 1
        %v381 = vsel %vm259, %v379, %v380
        %v382 = vrot.slane %v375, 1
        %v383 = vsel %vm259, %v380, %v382
        %v386 = vadd.f32 %v335, %v381
        %v387 = vadd.f32 %v336, %v383
        %s388 = sld [smem:[#allocation3 + $0x3b]]
        %v389 = vstv %s388
        %v390 = vmul.f32 %v389, %v194
        %v391 = vmul.f32 %v389, %v195
        %v392 = vmul.f32 %v389, %v196
        %v396 = vrot.slane %v390, 1
        %v397 = vrot.slane %v391, 1
        %v398 = vsel %vm259, %v396, %v397
        %v399 = vrot.slane %v392, 1
        %v400 = vsel %vm259, %v397, %v399
        %v403 = vadd.f32 %v352, %v398
        %v404 = vadd.f32 %v353, %v400
        %s405 = sld [smem:[#allocation3 + $0x6]]
        %v406 = vstv %s405
        %v407 = vmul.f32 %v406, %v181
        %v408 = vmul.f32 %v406, %v182
        %v409 = vmul.f32 %v406, %v183
        %vm413 = vcmask 1045504
        %v414 = vrot.slane %v407, 2
        %v415 = vrot.slane %v408, 2
        %v416 = vsel %vm413, %v414, %v415
        %v417 = vrot.slane %v409, 2
        %v418 = vsel %vm413, %v415, %v417
        %v421 = vadd.f32 %v369, %v416
        %v422 = vadd.f32 %v370, %v418
        %s423 = sld [smem:[#allocation3 + $0x21]]
        %v424 = vstv %s423
        %v425 = vmul.f32 %v424, %v181
        %v426 = vmul.f32 %v424, %v182
        %v427 = vmul.f32 %v424, %v183
        %v431 = vrot.slane %v425, 2
        %v432 = vrot.slane %v426, 2
        %v433 = vsel %vm413, %v431, %v432
        %v434 = vrot.slane %v427, 2
        %v435 = vsel %vm413, %v432, %v434
        %v438 = vadd.f32 %v386, %v433
        %v439 = vadd.f32 %v387, %v435
        %s440 = sld [smem:[#allocation3 + $0x3c]]
        %v441 = vstv %s440
        %v442 = vmul.f32 %v441, %v181
        %v443 = vmul.f32 %v441, %v182
        %v444 = vmul.f32 %v441, %v183
        %v448 = vrot.slane %v442, 2
        %v449 = vrot.slane %v443, 2
        %v450 = vsel %vm413, %v448, %v449
        %v451 = vrot.slane %v444, 2
        %v452 = vsel %vm413, %v449, %v451
        %v455 = vadd.f32 %v403, %v450
        %v456 = vadd.f32 %v404, %v452
        %s457 = sld [smem:[#allocation3 + $0x7]]
        %v458 = vstv %s457
        %v459 = vmul.f32 %v458, %v167
        %v460 = vmul.f32 %v458, %v163
        %v461 = vmul.f32 %v458, %v168
        %v465 = vrot.slane %v459, 2
        %v466 = vrot.slane %v460, 2
        %v467 = vsel %vm413, %v465, %v466
        %v468 = vrot.slane %v461, 2
        %v469 = vsel %vm413, %v466, %v468
        %v472 = vadd.f32 %v421, %v467
        %v473 = vadd.f32 %v422, %v469
        %s474 = sld [smem:[#allocation3 + $0x22]]
        %v475 = vstv %s474
        %v476 = vmul.f32 %v475, %v167
        %v477 = vmul.f32 %v475, %v163
        %v478 = vmul.f32 %v475, %v168
        %v482 = vrot.slane %v476, 2
        %v483 = vrot.slane %v477, 2
        %v484 = vsel %vm413, %v482, %v483
        %v485 = vrot.slane %v478, 2
        %v486 = vsel %vm413, %v483, %v485
        %v489 = vadd.f32 %v438, %v484
        %v490 = vadd.f32 %v439, %v486
        %s491 = sld [smem:[#allocation3 + $0x3d]]
        %v492 = vstv %s491
        %v493 = vmul.f32 %v492, %v167
        %v494 = vmul.f32 %v492, %v163
        %v495 = vmul.f32 %v492, %v168
        %v499 = vrot.slane %v493, 2
        %v500 = vrot.slane %v494, 2
        %v501 = vsel %vm413, %v499, %v500
        %v502 = vrot.slane %v495, 2
        %v503 = vsel %vm413, %v500, %v502
        %v506 = vadd.f32 %v455, %v501
        %v507 = vadd.f32 %v456, %v503
        %s508 = sld [smem:[#allocation3 + $0x8]]
        %v509 = vstv %s508
        %v510 = vmul.f32 %v509, %v194
        %v511 = vmul.f32 %v509, %v195
        %v512 = vmul.f32 %v509, %v196
        %v516 = vrot.slane %v510, 2
        %v517 = vrot.slane %v511, 2
        %v518 = vsel %vm413, %v516, %v517
        %v519 = vrot.slane %v512, 2
        %v520 = vsel %vm413, %v517, %v519
        %v523 = vadd.f32 %v472, %v518
        %v524 = vadd.f32 %v473, %v520
        %s525 = sld [smem:[#allocation3 + $0x23]]
        %v526 = vstv %s525
        %v527 = vmul.f32 %v526, %v194
        %v528 = vmul.f32 %v526, %v195
        %v529 = vmul.f32 %v526, %v196
        %v533 = vrot.slane %v527, 2
        %v534 = vrot.slane %v528, 2
        %v535 = vsel %vm413, %v533, %v534
        %v536 = vrot.slane %v529, 2
        %v537 = vsel %vm413, %v534, %v536
        %v540 = vadd.f32 %v489, %v535
        %v541 = vadd.f32 %v490, %v537
        %s542 = sld [smem:[#allocation3 + $0x3e]]
        %v543 = vstv %s542
        %v544 = vmul.f32 %v543, %v194
        %v545 = vmul.f32 %v543, %v195
        %v546 = vmul.f32 %v543, %v196
        %v550 = vrot.slane %v544, 2
        %v551 = vrot.slane %v545, 2
        %v552 = vsel %vm413, %v550, %v551
        %v553 = vrot.slane %v546, 2
        %v554 = vsel %vm413, %v551, %v553
        %v557 = vadd.f32 %v506, %v552
        %v558 = vadd.f32 %v507, %v554
        %s559 = scalar_lea.vmem %s128, 16 [#allocation5]
        %v560 = vld [vmem:[%s559] sm:$0xff]
        %v561 = vld [vmem:[%s559 + $0x8] sm:$0xff]
        %v562 = vsel %vm155, %v560, 0.0
        %v563 = vsel %vm155, %v561, 0.0
        %v566 = vrot.slane %v562, 7
        %v567 = vrot.slane %v563, 7
        %v568 = vsel %vm160, %v566, %v567
        %v572 = vsel %vm160, 0.0, %v566
        %v573 = vsel %vm160, %v567, 0.0
        %576 = vrot.lane.b32.xlu0 %v572, 1
        %v577 = vpop.permute.xlu0 %576
        %578 = vrot.lane.b32.xlu0 %v568, 1
        %v579 = vpop.permute.xlu0 %578
        %580 = vrot.lane.b32.xlu0 %v573, 1
        %v581 = vpop.permute.xlu0 %580
        %v585 = vsel %vm180, 0.0, %v577
        %v586 = vsel %vm180, 0.0, %v579
        %v587 = vsel %vm180, 0.0, %v581
        %588 = vrot.lane.b32.xlu0 %v572, 127
        %v589 = vpop.permute.xlu0 %588
        %590 = vrot.lane.b32.xlu0 %v568, 127
        %v591 = vpop.permute.xlu0 %590
        %592 = vrot.lane.b32.xlu0 %v573, 127
        %v593 = vpop.permute.xlu0 %592
        %v597 = vsel %vm193, %v589, 0.0
        %v598 = vsel %vm193, %v591, 0.0
        %v599 = vsel %vm193, %v593, 0.0
        %s600 = sld [smem:[#allocation3 + $0x9]]
        %v601 = vstv %s600
        %v602 = vmul.f32 %v601, %v585
        %v603 = vmul.f32 %v601, %v586
        %v604 = vadd.f32 %v523, %v602
        %v605 = vadd.f32 %v524, %v603
        %s606 = sld [smem:[#allocation3 + $0x24]]
        %v607 = vstv %s606
        %v608 = vmul.f32 %v607, %v585
        %v609 = vmul.f32 %v607, %v586
        %v610 = vadd.f32 %v540, %v608
        %v611 = vadd.f32 %v541, %v609
        %s612 = sld [smem:[#allocation3 + $0x3f]]
        %v613 = vstv %s612
        %v614 = vmul.f32 %v613, %v585
        %v615 = vmul.f32 %v613, %v586
        %v616 = vadd.f32 %v557, %v614
        %v617 = vadd.f32 %v558, %v615
        %s618 = sld [smem:[#allocation3 + $0xa]]
        %v619 = vstv %s618
        %v620 = vmul.f32 %v619, %v572
        %v621 = vmul.f32 %v619, %v568
        %v622 = vadd.f32 %v604, %v620
        %v623 = vadd.f32 %v605, %v621
        %s624 = sld [smem:[#allocation3 + $0x25]]
        %v625 = vstv %s624
        %v626 = vmul.f32 %v625, %v572
        %v627 = vmul.f32 %v625, %v568
        %v628 = vadd.f32 %v610, %v626
        %v629 = vadd.f32 %v611, %v627
        %s630 = sld [smem:[#allocation3 + $0x40]]
        %v631 = vstv %s630
        %v632 = vmul.f32 %v631, %v572
        %v633 = vmul.f32 %v631, %v568
        %v634 = vadd.f32 %v616, %v632
        %v635 = vadd.f32 %v617, %v633
        %s636 = sld [smem:[#allocation3 + $0xb]]
        %v637 = vstv %s636
        %v638 = vmul.f32 %v637, %v597
        %v639 = vmul.f32 %v637, %v598
        %v640 = vadd.f32 %v622, %v638
        %v641 = vadd.f32 %v623, %v639
        %s642 = sld [smem:[#allocation3 + $0x26]]
        %v643 = vstv %s642
        %v644 = vmul.f32 %v643, %v597
        %v645 = vmul.f32 %v643, %v598
        %v646 = vadd.f32 %v628, %v644
        %v647 = vadd.f32 %v629, %v645
        %s648 = sld [smem:[#allocation3 + $0x41]]
        %v649 = vstv %s648
        %v650 = vmul.f32 %v649, %v597
        %v651 = vmul.f32 %v649, %v598
        %v652 = vadd.f32 %v634, %v650
        %v653 = vadd.f32 %v635, %v651
        %s654 = sld [smem:[#allocation3 + $0xc]]
        %v655 = vstv %s654
        %v656 = vmul.f32 %v655, %v585
        %v657 = vmul.f32 %v655, %v586
        %v658 = vmul.f32 %v655, %v587
        %v662 = vrot.slane %v656, 1
        %v663 = vrot.slane %v657, 1
        %v664 = vsel %vm259, %v662, %v663
        %v665 = vrot.slane %v658, 1
        %v666 = vsel %vm259, %v663, %v665
        %v669 = vadd.f32 %v640, %v664
        %v670 = vadd.f32 %v641, %v666
        %s671 = sld [smem:[#allocation3 + $0x27]]
        %v672 = vstv %s671
        %v673 = vmul.f32 %v672, %v585
        %v674 = vmul.f32 %v672, %v586
        %v675 = vmul.f32 %v672, %v587
        %v679 = vrot.slane %v673, 1
        %v680 = vrot.slane %v674, 1
        %v681 = vsel %vm259, %v679, %v680
        %v682 = vrot.slane %v675, 1
        %v683 = vsel %vm259, %v680, %v682
        %v686 = vadd.f32 %v646, %v681
        %v687 = vadd.f32 %v647, %v683
        %s688 = sld [smem:[#allocation3 + $0x42]]
        %v689 = vstv %s688
        %v690 = vmul.f32 %v689, %v585
        %v691 = vmul.f32 %v689, %v586
        %v692 = vmul.f32 %v689, %v587
        %v696 = vrot.slane %v690, 1
        %v697 = vrot.slane %v691, 1
        %v698 = vsel %vm259, %v696, %v697
        %v699 = vrot.slane %v692, 1
        %v700 = vsel %vm259, %v697, %v699
        %v703 = vadd.f32 %v652, %v698
        %v704 = vadd.f32 %v653, %v700
        %s705 = sld [smem:[#allocation3 + $0xd]]
        %v706 = vstv %s705
        %v707 = vmul.f32 %v706, %v572
        %v708 = vmul.f32 %v706, %v568
        %v709 = vmul.f32 %v706, %v573
        %v713 = vrot.slane %v707, 1
        %v714 = vrot.slane %v708, 1
        %v715 = vsel %vm259, %v713, %v714
        %v716 = vrot.slane %v709, 1
        %v717 = vsel %vm259, %v714, %v716
        %v720 = vadd.f32 %v669, %v715
        %v721 = vadd.f32 %v670, %v717
        %s722 = sld [smem:[#allocation3 + $0x28]]
        %v723 = vstv %s722
        %v724 = vmul.f32 %v723, %v572
        %v725 = vmul.f32 %v723, %v568
        %v726 = vmul.f32 %v723, %v573
        %v730 = vrot.slane %v724, 1
        %v731 = vrot.slane %v725, 1
        %v732 = vsel %vm259, %v730, %v731
        %v733 = vrot.slane %v726, 1
        %v734 = vsel %vm259, %v731, %v733
        %v737 = vadd.f32 %v686, %v732
        %v738 = vadd.f32 %v687, %v734
        %s739 = sld [smem:[#allocation3 + $0x43]]
        %v740 = vstv %s739
        %v741 = vmul.f32 %v740, %v572
        %v742 = vmul.f32 %v740, %v568
        %v743 = vmul.f32 %v740, %v573
        %v747 = vrot.slane %v741, 1
        %v748 = vrot.slane %v742, 1
        %v749 = vsel %vm259, %v747, %v748
        %v750 = vrot.slane %v743, 1
        %v751 = vsel %vm259, %v748, %v750
        %v754 = vadd.f32 %v703, %v749
        %v755 = vadd.f32 %v704, %v751
        %s756 = sld [smem:[#allocation3 + $0xe]]
        %v757 = vstv %s756
        %v758 = vmul.f32 %v757, %v597
        %v759 = vmul.f32 %v757, %v598
        %v760 = vmul.f32 %v757, %v599
        %v764 = vrot.slane %v758, 1
        %v765 = vrot.slane %v759, 1
        %v766 = vsel %vm259, %v764, %v765
        %v767 = vrot.slane %v760, 1
        %v768 = vsel %vm259, %v765, %v767
        %v771 = vadd.f32 %v720, %v766
        %v772 = vadd.f32 %v721, %v768
        %s773 = sld [smem:[#allocation3 + $0x29]]
        %v774 = vstv %s773
        %v775 = vmul.f32 %v774, %v597
        %v776 = vmul.f32 %v774, %v598
        %v777 = vmul.f32 %v774, %v599
        %v781 = vrot.slane %v775, 1
        %v782 = vrot.slane %v776, 1
        %v783 = vsel %vm259, %v781, %v782
        %v784 = vrot.slane %v777, 1
        %v785 = vsel %vm259, %v782, %v784
        %v788 = vadd.f32 %v737, %v783
        %v789 = vadd.f32 %v738, %v785
        %s790 = sld [smem:[#allocation3 + $0x44]]
        %v791 = vstv %s790
        %v792 = vmul.f32 %v791, %v597
        %v793 = vmul.f32 %v791, %v598
        %v794 = vmul.f32 %v791, %v599
        %v798 = vrot.slane %v792, 1
        %v799 = vrot.slane %v793, 1
        %v800 = vsel %vm259, %v798, %v799
        %v801 = vrot.slane %v794, 1
        %v802 = vsel %vm259, %v799, %v801
        %v805 = vadd.f32 %v754, %v800
        %v806 = vadd.f32 %v755, %v802
        %s807 = sld [smem:[#allocation3 + $0xf]]
        %v808 = vstv %s807
        %v809 = vmul.f32 %v808, %v585
        %v810 = vmul.f32 %v808, %v586
        %v811 = vmul.f32 %v808, %v587
        %v815 = vrot.slane %v809, 2
        %v816 = vrot.slane %v810, 2
        %v817 = vsel %vm413, %v815, %v816
        %v818 = vrot.slane %v811, 2
        %v819 = vsel %vm413, %v816, %v818
        %v822 = vadd.f32 %v771, %v817
        %v823 = vadd.f32 %v772, %v819
        %s824 = sld [smem:[#allocation3 + $0x2a]]
        %v825 = vstv %s824
        %v826 = vmul.f32 %v825, %v585
        %v827 = vmul.f32 %v825, %v586
        %v828 = vmul.f32 %v825, %v587
        %v832 = vrot.slane %v826, 2
        %v833 = vrot.slane %v827, 2
        %v834 = vsel %vm413, %v832, %v833
        %v835 = vrot.slane %v828, 2
        %v836 = vsel %vm413, %v833, %v835
        %v839 = vadd.f32 %v788, %v834
        %v840 = vadd.f32 %v789, %v836
        %s841 = sld [smem:[#allocation3 + $0x45]]
        %v842 = vstv %s841
        %v843 = vmul.f32 %v842, %v585
        %v844 = vmul.f32 %v842, %v586
        %v845 = vmul.f32 %v842, %v587
        %v849 = vrot.slane %v843, 2
        %v850 = vrot.slane %v844, 2
        %v851 = vsel %vm413, %v849, %v850
        %v852 = vrot.slane %v845, 2
        %v853 = vsel %vm413, %v850, %v852
        %v856 = vadd.f32 %v805, %v851
        %v857 = vadd.f32 %v806, %v853
        %s858 = sld [smem:[#allocation3 + $0x10]]
        %v859 = vstv %s858
        %v860 = vmul.f32 %v859, %v572
        %v861 = vmul.f32 %v859, %v568
        %v862 = vmul.f32 %v859, %v573
        %v866 = vrot.slane %v860, 2
        %v867 = vrot.slane %v861, 2
        %v868 = vsel %vm413, %v866, %v867
        %v869 = vrot.slane %v862, 2
        %v870 = vsel %vm413, %v867, %v869
        %v873 = vadd.f32 %v822, %v868
        %v874 = vadd.f32 %v823, %v870
        %s875 = sld [smem:[#allocation3 + $0x2b]]
        %v876 = vstv %s875
        %v877 = vmul.f32 %v876, %v572
        %v878 = vmul.f32 %v876, %v568
        %v879 = vmul.f32 %v876, %v573
        %v883 = vrot.slane %v877, 2
        %v884 = vrot.slane %v878, 2
        %v885 = vsel %vm413, %v883, %v884
        %v886 = vrot.slane %v879, 2
        %v887 = vsel %vm413, %v884, %v886
        %v890 = vadd.f32 %v839, %v885
        %v891 = vadd.f32 %v840, %v887
        %s892 = sld [smem:[#allocation3 + $0x46]]
        %v893 = vstv %s892
        %v894 = vmul.f32 %v893, %v572
        %v895 = vmul.f32 %v893, %v568
        %v896 = vmul.f32 %v893, %v573
        %v900 = vrot.slane %v894, 2
        %v901 = vrot.slane %v895, 2
        %v902 = vsel %vm413, %v900, %v901
        %v903 = vrot.slane %v896, 2
        %v904 = vsel %vm413, %v901, %v903
        %v907 = vadd.f32 %v856, %v902
        %v908 = vadd.f32 %v857, %v904
        %s909 = sld [smem:[#allocation3 + $0x11]]
        %v910 = vstv %s909
        %v911 = vmul.f32 %v910, %v597
        %v912 = vmul.f32 %v910, %v598
        %v913 = vmul.f32 %v910, %v599
        %v917 = vrot.slane %v911, 2
        %v918 = vrot.slane %v912, 2
        %v919 = vsel %vm413, %v917, %v918
        %v920 = vrot.slane %v913, 2
        %v921 = vsel %vm413, %v918, %v920
        %v924 = vadd.f32 %v873, %v919
        %v925 = vadd.f32 %v874, %v921
        %s926 = sld [smem:[#allocation3 + $0x2c]]
        %v927 = vstv %s926
        %v928 = vmul.f32 %v927, %v597
        %v929 = vmul.f32 %v927, %v598
        %v930 = vmul.f32 %v927, %v599
        %v934 = vrot.slane %v928, 2
        %v935 = vrot.slane %v929, 2
        %v936 = vsel %vm413, %v934, %v935
        %v937 = vrot.slane %v930, 2
        %v938 = vsel %vm413, %v935, %v937
        %v941 = vadd.f32 %v890, %v936
        %v942 = vadd.f32 %v891, %v938
        %s943 = sld [smem:[#allocation3 + $0x47]]
        %v944 = vstv %s943
        %v945 = vmul.f32 %v944, %v597
        %v946 = vmul.f32 %v944, %v598
        %v947 = vmul.f32 %v944, %v599
        %v951 = vrot.slane %v945, 2
        %v952 = vrot.slane %v946, 2
        %v953 = vsel %vm413, %v951, %v952
        %v954 = vrot.slane %v947, 2
        %v955 = vsel %vm413, %v952, %v954
        %v958 = vadd.f32 %v907, %v953
        %v959 = vadd.f32 %v908, %v955
        %s960 = scalar_lea.vmem %s128, 32 [#allocation5]
        %v961 = vld [vmem:[%s960] sm:$0xff]
        %v962 = vld [vmem:[%s960 + $0x8] sm:$0xff]
        %v963 = vsel %vm155, %v961, 0.0
        %v964 = vsel %vm155, %v962, 0.0
        %v967 = vrot.slane %v963, 7
        %v968 = vrot.slane %v964, 7
        %v969 = vsel %vm160, %v967, %v968
        %v973 = vsel %vm160, 0.0, %v967
        %v974 = vsel %vm160, %v968, 0.0
        %977 = vrot.lane.b32.xlu0 %v973, 1
        %v978 = vpop.permute.xlu0 %977
        %979 = vrot.lane.b32.xlu0 %v969, 1
        %v980 = vpop.permute.xlu0 %979
        %981 = vrot.lane.b32.xlu0 %v974, 1
        %v982 = vpop.permute.xlu0 %981
        %v986 = vsel %vm180, 0.0, %v978
        %v987 = vsel %vm180, 0.0, %v980
        %v988 = vsel %vm180, 0.0, %v982
        %989 = vrot.lane.b32.xlu0 %v973, 127
        %v990 = vpop.permute.xlu0 %989
        %991 = vrot.lane.b32.xlu0 %v969, 127
        %v992 = vpop.permute.xlu0 %991
        %993 = vrot.lane.b32.xlu0 %v974, 127
        %v994 = vpop.permute.xlu0 %993
        %v998 = vsel %vm193, %v990, 0.0
        %v999 = vsel %vm193, %v992, 0.0
        %v1000 = vsel %vm193, %v994, 0.0
        %s1001 = sld [smem:[#allocation3 + $0x12]]
        %v1002 = vstv %s1001
        %v1003 = vmul.f32 %v1002, %v986
        %v1004 = vmul.f32 %v1002, %v987
        %v1005 = vadd.f32 %v924, %v1003
        %v1006 = vadd.f32 %v925, %v1004
        %s1007 = sld [smem:[#allocation3 + $0x2d]]
        %v1008 = vstv %s1007
        %v1009 = vmul.f32 %v1008, %v986
        %v1010 = vmul.f32 %v1008, %v987
        %v1011 = vadd.f32 %v941, %v1009
        %v1012 = vadd.f32 %v942, %v1010
        %s1013 = sld [smem:[#allocation3 + $0x48]]
        %v1014 = vstv %s1013
        %v1015 = vmul.f32 %v1014, %v986
        %v1016 = vmul.f32 %v1014, %v987
        %v1017 = vadd.f32 %v958, %v1015
        %v1018 = vadd.f32 %v959, %v1016
        %s1019 = sld [smem:[#allocation3 + $0x13]]
        %v1020 = vstv %s1019
        %v1021 = vmul.f32 %v1020, %v973
        %v1022 = vmul.f32 %v1020, %v969
        %v1023 = vadd.f32 %v1005, %v1021
        %v1024 = vadd.f32 %v1006, %v1022
        %s1025 = sld [smem:[#allocation3 + $0x2e]]
        %v1026 = vstv %s1025
        %v1027 = vmul.f32 %v1026, %v973
        %v1028 = vmul.f32 %v1026, %v969
        %v1029 = vadd.f32 %v1011, %v1027
        %v1030 = vadd.f32 %v1012, %v1028
        %s1031 = sld [smem:[#allocation3 + $0x49]]
        %v1032 = vstv %s1031
        %v1033 = vmul.f32 %v1032, %v973
        %v1034 = vmul.f32 %v1032, %v969
        %v1035 = vadd.f32 %v1017, %v1033
        %v1036 = vadd.f32 %v1018, %v1034
        %s1037 = sld [smem:[#allocation3 + $0x14]]
        %v1038 = vstv %s1037
        %v1039 = vmul.f32 %v1038, %v998
        %v1040 = vmul.f32 %v1038, %v999
        %v1041 = vadd.f32 %v1023, %v1039
        %v1042 = vadd.f32 %v1024, %v1040
        %s1043 = sld [smem:[#allocation3 + $0x2f]]
        %v1044 = vstv %s1043
        %v1045 = vmul.f32 %v1044, %v998
        %v1046 = vmul.f32 %v1044, %v999
        %v1047 = vadd.f32 %v1029, %v1045
        %v1048 = vadd.f32 %v1030, %v1046
        %s1049 = sld [smem:[#allocation3 + $0x4a]]
        %v1050 = vstv %s1049
        %v1051 = vmul.f32 %v1050, %v998
        %v1052 = vmul.f32 %v1050, %v999
        %v1053 = vadd.f32 %v1035, %v1051
        %v1054 = vadd.f32 %v1036, %v1052
        %s1055 = sld [smem:[#allocation3 + $0x15]]
        %v1056 = vstv %s1055
        %v1057 = vmul.f32 %v1056, %v986
        %v1058 = vmul.f32 %v1056, %v987
        %v1059 = vmul.f32 %v1056, %v988
        %v1063 = vrot.slane %v1057, 1
        %v1064 = vrot.slane %v1058, 1
        %v1065 = vsel %vm259, %v1063, %v1064
        %v1066 = vrot.slane %v1059, 1
        %v1067 = vsel %vm259, %v1064, %v1066
        %v1070 = vadd.f32 %v1041, %v1065
        %v1071 = vadd.f32 %v1042, %v1067
        %s1072 = sld [smem:[#allocation3 + $0x30]]
        %v1073 = vstv %s1072
        %v1074 = vmul.f32 %v1073, %v986
        %v1075 = vmul.f32 %v1073, %v987
        %v1076 = vmul.f32 %v1073, %v988
        %v1080 = vrot.slane %v1074, 1
        %v1081 = vrot.slane %v1075, 1
        %v1082 = vsel %vm259, %v1080, %v1081
        %v1083 = vrot.slane %v1076, 1
        %v1084 = vsel %vm259, %v1081, %v1083
        %v1087 = vadd.f32 %v1047, %v1082
        %v1088 = vadd.f32 %v1048, %v1084
        %s1089 = sld [smem:[#allocation3 + $0x4b]]
        %v1090 = vstv %s1089
        %v1091 = vmul.f32 %v1090, %v986
        %v1092 = vmul.f32 %v1090, %v987
        %v1093 = vmul.f32 %v1090, %v988
        %v1097 = vrot.slane %v1091, 1
        %v1098 = vrot.slane %v1092, 1
        %v1099 = vsel %vm259, %v1097, %v1098
        %v1100 = vrot.slane %v1093, 1
        %v1101 = vsel %vm259, %v1098, %v1100
        %v1104 = vadd.f32 %v1053, %v1099
        %v1105 = vadd.f32 %v1054, %v1101
        %s1106 = sld [smem:[#allocation3 + $0x16]]
        %v1107 = vstv %s1106
        %v1108 = vmul.f32 %v1107, %v973
        %v1109 = vmul.f32 %v1107, %v969
        %v1110 = vmul.f32 %v1107, %v974
        %v1114 = vrot.slane %v1108, 1
        %v1115 = vrot.slane %v1109, 1
        %v1116 = vsel %vm259, %v1114, %v1115
        %v1117 = vrot.slane %v1110, 1
        %v1118 = vsel %vm259, %v1115, %v1117
        %v1121 = vadd.f32 %v1070, %v1116
        %v1122 = vadd.f32 %v1071, %v1118
        %s1123 = sld [smem:[#allocation3 + $0x31]]
        %v1124 = vstv %s1123
        %v1125 = vmul.f32 %v1124, %v973
        %v1126 = vmul.f32 %v1124, %v969
        %v1127 = vmul.f32 %v1124, %v974
        %v1131 = vrot.slane %v1125, 1
        %v1132 = vrot.slane %v1126, 1
        %v1133 = vsel %vm259, %v1131, %v1132
        %v1134 = vrot.slane %v1127, 1
        %v1135 = vsel %vm259, %v1132, %v1134
        %v1138 = vadd.f32 %v1087, %v1133
        %v1139 = vadd.f32 %v1088, %v1135
        %s1140 = sld [smem:[#allocation3 + $0x4c]]
        %v1141 = vstv %s1140
        %v1142 = vmul.f32 %v1141, %v973
        %v1143 = vmul.f32 %v1141, %v969
        %v1144 = vmul.f32 %v1141, %v974
        %v1148 = vrot.slane %v1142, 1
        %v1149 = vrot.slane %v1143, 1
        %v1150 = vsel %vm259, %v1148, %v1149
        %v1151 = vrot.slane %v1144, 1
        %v1152 = vsel %vm259, %v1149, %v1151
        %v1155 = vadd.f32 %v1104, %v1150
        %v1156 = vadd.f32 %v1105, %v1152
        %s1157 = sld [smem:[#allocation3 + $0x17]]
        %v1158 = vstv %s1157
        %v1159 = vmul.f32 %v1158, %v998
        %v1160 = vmul.f32 %v1158, %v999
        %v1161 = vmul.f32 %v1158, %v1000
        %v1165 = vrot.slane %v1159, 1
        %v1166 = vrot.slane %v1160, 1
        %v1167 = vsel %vm259, %v1165, %v1166
        %v1168 = vrot.slane %v1161, 1
        %v1169 = vsel %vm259, %v1166, %v1168
        %v1172 = vadd.f32 %v1121, %v1167
        %v1173 = vadd.f32 %v1122, %v1169
        %s1174 = sld [smem:[#allocation3 + $0x32]]
        %v1175 = vstv %s1174
        %v1176 = vmul.f32 %v1175, %v998
        %v1177 = vmul.f32 %v1175, %v999
        %v1178 = vmul.f32 %v1175, %v1000
        %v1182 = vrot.slane %v1176, 1
        %v1183 = vrot.slane %v1177, 1
        %v1184 = vsel %vm259, %v1182, %v1183
        %v1185 = vrot.slane %v1178, 1
        %v1186 = vsel %vm259, %v1183, %v1185
        %v1189 = vadd.f32 %v1138, %v1184
        %v1190 = vadd.f32 %v1139, %v1186
        %s1191 = sld [smem:[#allocation3 + $0x4d]]
        %v1192 = vstv %s1191
        %v1193 = vmul.f32 %v1192, %v998
        %v1194 = vmul.f32 %v1192, %v999
        %v1195 = vmul.f32 %v1192, %v1000
        %v1199 = vrot.slane %v1193, 1
        %v1200 = vrot.slane %v1194, 1
        %v1201 = vsel %vm259, %v1199, %v1200
        %v1202 = vrot.slane %v1195, 1
        %v1203 = vsel %vm259, %v1200, %v1202
        %v1206 = vadd.f32 %v1155, %v1201
        %v1207 = vadd.f32 %v1156, %v1203
        %s1208 = sld [smem:[#allocation3 + $0x18]]
        %v1209 = vstv %s1208
        %v1210 = vmul.f32 %v1209, %v986
        %v1211 = vmul.f32 %v1209, %v987
        %v1212 = vmul.f32 %v1209, %v988
        %v1216 = vrot.slane %v1210, 2
        %v1217 = vrot.slane %v1211, 2
        %v1218 = vsel %vm413, %v1216, %v1217
        %v1219 = vrot.slane %v1212, 2
        %v1220 = vsel %vm413, %v1217, %v1219
        %v1223 = vadd.f32 %v1172, %v1218
        %v1224 = vadd.f32 %v1173, %v1220
        %s1225 = sld [smem:[#allocation3 + $0x33]]
        %v1226 = vstv %s1225
        %v1227 = vmul.f32 %v1226, %v986
        %v1228 = vmul.f32 %v1226, %v987
        %v1229 = vmul.f32 %v1226, %v988
        %v1233 = vrot.slane %v1227, 2
        %v1234 = vrot.slane %v1228, 2
        %v1235 = vsel %vm413, %v1233, %v1234
        %v1236 = vrot.slane %v1229, 2
        %v1237 = vsel %vm413, %v1234, %v1236
        %v1240 = vadd.f32 %v1189, %v1235
        %v1241 = vadd.f32 %v1190, %v1237
        %s1242 = sld [smem:[#allocation3 + $0x4e]]
        %v1243 = vstv %s1242
        %v1244 = vmul.f32 %v1243, %v986
        %v1245 = vmul.f32 %v1243, %v987
        %v1246 = vmul.f32 %v1243, %v988
        %v1250 = vrot.slane %v1244, 2
        %v1251 = vrot.slane %v1245, 2
        %v1252 = vsel %vm413, %v1250, %v1251
        %v1253 = vrot.slane %v1246, 2
        %v1254 = vsel %vm413, %v1251, %v1253
        %v1257 = vadd.f32 %v1206, %v1252
        %v1258 = vadd.f32 %v1207, %v1254
        %s1259 = sld [smem:[#allocation3 + $0x19]]
        %v1260 = vstv %s1259
        %v1261 = vmul.f32 %v1260, %v973
        %v1262 = vmul.f32 %v1260, %v969
        %v1263 = vmul.f32 %v1260, %v974
        %v1267 = vrot.slane %v1261, 2
        %v1268 = vrot.slane %v1262, 2
        %v1269 = vsel %vm413, %v1267, %v1268
        %v1270 = vrot.slane %v1263, 2
        %v1271 = vsel %vm413, %v1268, %v1270
        %v1274 = vadd.f32 %v1223, %v1269
        %v1275 = vadd.f32 %v1224, %v1271
        %s1276 = sld [smem:[#allocation3 + $0x34]]
        %v1277 = vstv %s1276
        %v1278 = vmul.f32 %v1277, %v973
        %v1279 = vmul.f32 %v1277, %v969
        %v1280 = vmul.f32 %v1277, %v974
        %v1284 = vrot.slane %v1278, 2
        %v1285 = vrot.slane %v1279, 2
        %v1286 = vsel %vm413, %v1284, %v1285
        %v1287 = vrot.slane %v1280, 2
        %v1288 = vsel %vm413, %v1285, %v1287
        %v1291 = vadd.f32 %v1240, %v1286
        %v1292 = vadd.f32 %v1241, %v1288
        %s1293 = sld [smem:[#allocation3 + $0x4f]]
        %v1294 = vstv %s1293
        %v1295 = vmul.f32 %v1294, %v973
        %v1296 = vmul.f32 %v1294, %v969
        %v1297 = vmul.f32 %v1294, %v974
        %v1301 = vrot.slane %v1295, 2
        %v1302 = vrot.slane %v1296, 2
        %v1303 = vsel %vm413, %v1301, %v1302
        %v1304 = vrot.slane %v1297, 2
        %v1305 = vsel %vm413, %v1302, %v1304
        %v1308 = vadd.f32 %v1257, %v1303
        %v1309 = vadd.f32 %v1258, %v1305
        %s1310 = sld [smem:[#allocation3 + $0x1a]]
        %v1311 = vstv %s1310
        %v1312 = vmul.f32 %v1311, %v998
        %v1313 = vmul.f32 %v1311, %v999
        %v1314 = vmul.f32 %v1311, %v1000
        %v1318 = vrot.slane %v1312, 2
        %v1319 = vrot.slane %v1313, 2
        %v1320 = vsel %vm413, %v1318, %v1319
        %v1321 = vrot.slane %v1314, 2
        %v1322 = vsel %vm413, %v1319, %v1321
        %v1325 = vadd.f32 %v1274, %v1320
        %v1326 = vadd.f32 %v1275, %v1322
        %s1327 = sld [smem:[#allocation3 + $0x35]]
        %v1328 = vstv %s1327
        %v1329 = vmul.f32 %v1328, %v998
        %v1330 = vmul.f32 %v1328, %v999
        %v1331 = vmul.f32 %v1328, %v1000
        %v1335 = vrot.slane %v1329, 2
        %v1336 = vrot.slane %v1330, 2
        %v1337 = vsel %vm413, %v1335, %v1336
        %v1338 = vrot.slane %v1331, 2
        %v1339 = vsel %vm413, %v1336, %v1338
        %v1342 = vadd.f32 %v1291, %v1337
        %v1343 = vadd.f32 %v1292, %v1339
        %s1344 = sld [smem:[#allocation3 + $0x50]]
        %v1345 = vstv %s1344
        %v1346 = vmul.f32 %v1345, %v998
        %v1347 = vmul.f32 %v1345, %v999
        %v1348 = vmul.f32 %v1345, %v1000
        %v1352 = vrot.slane %v1346, 2
        %v1353 = vrot.slane %v1347, 2
        %v1354 = vsel %vm413, %v1352, %v1353
        %v1355 = vrot.slane %v1348, 2
        %v1356 = vsel %vm413, %v1353, %v1355
        %v1359 = vadd.f32 %v1308, %v1354
        %v1360 = vadd.f32 %v1309, %v1356
        %1361 = vst [vmem:[%s146] sm:$0xff] %v1325
        %1362 = vst [vmem:[%s146 + $0x8] sm:$0xff] %v1326
        %s1363 = scalar_lea.vmem %s146, 16 [#allocation8]
        %1364 = vst [vmem:[%s1363] sm:$0xff] %v1342
        %1365 = vst [vmem:[%s1363 + $0x8] sm:$0xff] %v1343
        %s1366 = scalar_lea.vmem %s146, 32 [#allocation8]
        %1367 = vst [vmem:[%s1366] sm:$0xff] %v1359
        %1368 = vst [vmem:[%s1366 + $0x8] sm:$0xff] %v1360
        %s1369 = sand.u32 %s64, 1
        %s1370 = scalar_lea.sflag [#allocation7], %s1369
        %s1371 = sand.u32 %s64, 1
        %s1372 = smul.addr %s1371, 48
        %s1373 = scalar_lea.vmem [#allocation8], %s1372
        // Predicated region
        $region29: #{interpolate_example_forward.1} parent=23 // pred_check
          %p1374 = pneg %p74
        $region30: #{interpolate_example_forward.1} parent=23 // pred_check_branch
          %1376 = sbr.rel (%p1374) target = $region32
        $region31: #{interpolate_example_forward.1} parent=23 // pred_region
          %s1378 = ssub.s32 768, 768
          %1379 = vsyncadd %s1370, %s1378
          %s1380 = smul.addr %s30, 6
          %s1381 = smul.addr %s1380, 128
          %s1382 = scalar_lea.hbm %s3, %s1381
          %s1383 = sshll.u32 %s1373, 4
          %s1384 = int_to_ptr.vmem [resolvable:$true] %s1383
          %1389 = dma.vmem_to_hbm [thread:$0]  %s1384, 768, %s1382, %s1370, 128, 128, 8
        $region32: #{interpolate_example_forward.1} parent=23 // pred_fallthru
          _
      $region24: #{interpolate_example_forward.1} parent=5 // pred_fallthru
        _
      %p1390 = scmp.le.s32.totalorder 2, %s25
      // Predicated region
      $region33: #{interpolate_example_forward.1} parent=5 // pred_check
        %p1391 = pneg %p1390
      $region34: #{interpolate_example_forward.1} parent=5 // pred_check_branch
        %1393 = sbr.rel (%p1391) target = $region36
      $region35: #{interpolate_example_forward.1} parent=5 // pred_region
        %s1394 = ssub.s32 %s25, 2
        // Predicated region
        $region37: #{interpolate_example_forward.1} parent=35 // pred_check
          %p1395 = pneg %p80
        $region38: #{interpolate_example_forward.1} parent=35 // pred_check_branch
          %1397 = sbr.rel (%p1395) target = $region40
        $region39: #{interpolate_example_forward.1} parent=35 // pred_region
          %s1398 = sand.u32 %s65, 1
          %s1399 = scalar_lea.sflag [#allocation7], %s1398
          %s1400 = sand.u32 %s65, 1
          %s1401 = smul.addr %s1400, 48
          %s1402 = scalar_lea.vmem [#allocation8], %s1401
          %1403 = dma.done %s1399, 768
        $region40: #{interpolate_example_forward.1} parent=35 // pred_fallthru
          _
      $region36: #{interpolate_example_forward.1} parent=5 // pred_fallthru
        _
    $region6: #{interpolate_example_forward.1} parent=1 // loop_footer
      %s29 = sadd.s32 1, %s25
    $region7: #{interpolate_example_forward.1} parent=1 // loop_footer_branch
      %24 = sbr.rel target = $region3
    $region8: #{interpolate_example_forward.1} parent=1 // loop_exit
      _
    %1404 = vsyncpa [#allocation6], 1
    %s1405 = scalar_lea.sflag [#allocation6], 1
    %1406 = vsyncpa %s1405, 1
    %1407 = vsyncpa [#allocation7], 1
    %s1408 = scalar_lea.sflag [#allocation7], 1
    %1409 = vsyncpa %s1408, 1

</llo_original>
